<compile_context>
chip_gen: v6e
topology: v6e:2x2x1
jax: 0.10.0
libtpu: 0.0.40
codegen_flags: <defaults>
</compile_context>

<pallas_src>
import math
import jax
import jax.numpy as jnp
from jax import lax
from jax.experimental import pallas as pl
from jax.experimental.pallas import tpu as pltpu


# ----------------------------------------------------------------------------
# Fused encoder-layer kernel (one batch item per grid step)
# ----------------------------------------------------------------------------
def encoder_layer_kernel(x_ref, wqkv_ref, bqkv_ref, wo_ref, bo_ref,
                         ln1_g_ref, ln1_b_ref,
                         w1_ref, b1_ref, w2_ref, b2_ref,
                         ln2_g_ref, ln2_b_ref, o_ref):
    x = x_ref[0]                                   # (S, D)
    H, dq, D = wo_ref.shape                        # static
    HK = H * dq
    scale = 1.0 / math.sqrt(dq)

    # ---- fused QKV projection: ONE lane-dense (S,D)@(D,3*H*dq) matmul ----
    qkv = jnp.dot(x, wqkv_ref[...], preferred_element_type=jnp.float32) + bqkv_ref[...]

    # Split into head-batched (H, S, dq) tensors via static lane slices.
    def head_batched(base):
        return jnp.stack(
            [qkv[:, base + h * dq: base + (h + 1) * dq] for h in range(H)], axis=0)

    q = head_batched(0) * scale                    # scale on q, not on (S,S) scores
    k = head_batched(HK)
    v = head_batched(2 * HK)

    # ---- attention, batched over heads (no per-head loop, no k.T) ----
    s = jnp.einsum('hqd,hkd->hqk', q, k, preferred_element_type=jnp.float32)  # (H,S,S)
    s = s - jnp.max(s, axis=-1, keepdims=True)
    p = jnp.exp(s)
    p = p * pl.reciprocal(jnp.sum(p, axis=-1, keepdims=True), approx=True)
    ctx = jnp.einsum('hqk,hkd->hqd', p, v, preferred_element_type=jnp.float32)  # (H,S,dq)

    # ---- output projection without the head concat:
    #      sum_h ctx_h @ Wo[h*dq:(h+1)*dq, :]  ==  concat(heads) @ Wo
    attn = jnp.einsum('hqd,hdf->hqf', ctx, wo_ref[...],
                      preferred_element_type=jnp.float32)       # (H, S, D)
    attn = jnp.sum(attn, axis=0) + bo_ref[...]                  # (S, D)

    # ---- residual + LayerNorm 1 (population variance, eps=1e-5, like torch) ----
    y = x + attn
    mu = jnp.mean(y, axis=-1, keepdims=True)
    var = jnp.mean((y - mu) ** 2, axis=-1, keepdims=True)
    y1 = (y - mu) * lax.rsqrt(var + 1e-5) * ln1_g_ref[...] + ln1_b_ref[...]

    # ---- feed-forward + residual + LayerNorm 2 ----
    hdn = jnp.dot(y1, w1_ref[...], preferred_element_type=jnp.float32) + b1_ref[...]
    hdn = jnp.maximum(hdn, 0.0)                                  # ReLU
    f = jnp.dot(hdn, w2_ref[...], preferred_element_type=jnp.float32) + b2_ref[...]

    y2 = y1 + f
    mu2 = jnp.mean(y2, axis=-1, keepdims=True)
    var2 = jnp.mean((y2 - mu2) ** 2, axis=-1, keepdims=True)
    o_ref[0] = (y2 - mu2) * lax.rsqrt(var2 + 1e-5) * ln2_g_ref[...] + ln2_b_ref[...]


# ----------------------------------------------------------------------------
# Wrapper: host-side weight packing + single pallas_call
# ----------------------------------------------------------------------------
def transformer_encoder_layer(x, params):
    B, S, D = x.shape
    (wq, bq, wk, bk, wv, bv, wo, bo,
     ln1_g, ln1_b, w1, b1, w2, b2, ln2_g, ln2_b) = params
    H, _, dq = wq.shape
    HK = H * dq
    F = w1.shape[1]

    # Pack per-head projection weights into one lane-dense (D, 3*H*dq) operand,
    # column order [q_h0..q_hH | k_h0.. | v_h0..] (matches in-kernel slicing).
    def fuse_w(w):    # (H, D, dq) -> (D, H*dq)
        return jnp.transpose(w, (1, 0, 2)).reshape(D, HK)

    def fuse_b(b):    # (H, dq) -> (1, H*dq)
        return b.reshape(1, HK)

    w_qkv = jnp.concatenate([fuse_w(wq), fuse_w(wk), fuse_w(wv)], axis=1)  # (D, 3HK)
    b_qkv = jnp.concatenate([fuse_b(bq), fuse_b(bk), fuse_b(bv)], axis=1)  # (1, 3HK)
    wo_h = wo.reshape(H, dq, D)                                            # per-head Wo blocks

    full = lambda shape: pl.BlockSpec(shape, lambda b: (0,) * len(shape))

    return pl.pallas_call(
        encoder_layer_kernel,
        out_shape=jax.ShapeDtypeStruct((B, S, D), jnp.float32),
        grid_spec=pltpu.PrefetchScalarGridSpec(
            num_scalar_prefetch=0,
            grid=(B,),
            in_specs=[
                pl.BlockSpec((1, S, D), lambda b: (b, 0, 0)),   # x
                full((D, 3 * HK)), full((1, 3 * HK)),           # fused Wqkv, bqkv
                full((H, dq, D)), full((1, D)),                 # Wo (head blocks), bo
                full((1, D)), full((1, D)),                     # LN1 gamma, beta
                full((D, F)), full((1, F)),                     # W1, b1
                full((F, D)), full((1, D)),                     # W2, b2
                full((1, D)), full((1, D)),                     # LN2 gamma, beta
            ],
            out_specs=pl.BlockSpec((1, S, D), lambda b: (b, 0, 0)),
        ),
        compiler_params=pltpu.CompilerParams(
            dimension_semantics=("parallel",)),
    )(x, w_qkv, b_qkv, wo_h, bo, ln1_g, ln1_b, w1, b1, w2, b2, ln2_g, ln2_b)


# ----------------------------------------------------------------------------
# Pure-JAX reference (per-head form, mirrors the PyTorch module)
# ----------------------------------------------------------------------------
def reference(x, params):
    (wq, bq, wk, bk, wv, bv, wo, bo,
     ln1_g, ln1_b, w1, b1, w2, b2, ln2_g, ln2_b) = params
    H, _, dq = wq.shape

    def ln(y, g, b):
        mu = jnp.mean(y, axis=-1, keepdims=True)
        var = jnp.mean((y - mu) ** 2, axis=-1, keepdims=True)
        return (y - mu) / jnp.sqrt(var + 1e-5) * g[0] + b[0]

    heads = []
    for h in range(H):
        q = x @ wq[h] + bq[h]
        k = x @ wk[h] + bk[h]
        v = x @ wv[h] + bv[h]
        s = jnp.einsum("bqd,bkd->bqk", q, k) / math.sqrt(dq)
        p = jax.nn.softmax(s, axis=-1)
        heads.append(jnp.einsum("bqk,bkd->bqd", p, v))
    attn = jnp.concatenate(heads, axis=-1) @ wo + bo[0]
    y = ln(x + attn, ln1_g, ln1_b)

    ff = jnp.maximum(y @ w1 + b1[0], 0.0) @ w2 + b2[0]
    return ln(y + ff, ln2_g, ln2_b)


# ----------------------------------------------------------------------------
# Main
# ----------------------------------------------------------------------------
if __name__ == "__main__":
    # Small shapes consistent with the module: dim_model=32, num_heads=4,
    # dim_q=dim_k=32//4=8, dim_feedforward=64, batch=2, seq=8.
    B, S, D, H, FF = 2, 8, 32, 4, 64
    dq = max(D // H, 1)

    key = jax.random.PRNGKey(0)
    ks = jax.random.split(key, 18)

    def init(k, shape, scale=0.05):
        return jax.random.normal(k, shape, dtype=jnp.float32) * scale

    params = (
        init(ks[0], (H, D, dq)), init(ks[1], (H, dq)),        # Wq, bq
        init(ks[2], (H, D, dq)), init(ks[3], (H, dq)),        # Wk, bk
        init(ks[4], (H, D, dq)), init(ks[5], (H, dq)),        # Wv, bv
        init(ks[6], (H * dq, D)), init(ks[7], (1, D)),        # Wo, bo
        1.0 + init(ks[13], (1, D)), init(ks[14], (1, D)),     # LN1 gamma, beta
        init(ks[8], (D, FF)), init(ks[9], (1, FF)),           # W1, b1
        init(ks[10], (FF, D)), init(ks[11], (1, D)),          # W2, b2
        1.0 + init(ks[15], (1, D)), init(ks[16], (1, D)),     # LN2 gamma, beta
    )

    x = jax.random.normal(ks[12], (B, S, D), dtype=jnp.float32)

    out = jax.block_until_ready(transformer_encoder_layer(x, params))
    ref = jax.block_until_ready(reference(x, params))

    assert out.shape == (B, S, D)
    max_err = float(jnp.max(jnp.abs(out - ref)))
    # Tolerance accounts for EUP approx reciprocal / rsqrt; structural bugs are >1e-2.
    assert jnp.allclose(out, ref, atol=2e-3, rtol=2e-3), \
        f"mismatch vs reference (max |err| = {max_err})"
    print("KERNEL_OK")
</pallas_src>

<mosaic_0001>
module attributes {stable_mosaic.version = 11 : i64} {
  func.func @encoder_layer_kernel(%arg0: i32, %arg1: memref<1x8x32xf32, #tpu.memory_space<vmem>>, %arg2: memref<32x96xf32, #tpu.memory_space<vmem>>, %arg3: memref<1x96xf32, #tpu.memory_space<vmem>>, %arg4: memref<4x8x32xf32, #tpu.memory_space<vmem>>, %arg5: memref<1x32xf32, #tpu.memory_space<vmem>>, %arg6: memref<1x32xf32, #tpu.memory_space<vmem>>, %arg7: memref<1x32xf32, #tpu.memory_space<vmem>>, %arg8: memref<32x64xf32, #tpu.memory_space<vmem>>, %arg9: memref<1x64xf32, #tpu.memory_space<vmem>>, %arg10: memref<64x32xf32, #tpu.memory_space<vmem>>, %arg11: memref<1x32xf32, #tpu.memory_space<vmem>>, %arg12: memref<1x32xf32, #tpu.memory_space<vmem>>, %arg13: memref<1x32xf32, #tpu.memory_space<vmem>>, %arg14: memref<1x8x32xf32, #tpu.memory_space<vmem>>) attributes {dimension_semantics = [#tpu.dimension_semantics<parallel>], iteration_bounds = array<i64: 2>, scalar_prefetch = 0 : i64, scratch_operands = 0 : i64, tpu.core_type = #tpu.core_type<tc>, window_params = [{transform_indices = @transform_0, window_bounds = array<i64: 1, 8, 32>}, {pipeline_mode = #tpu.pipeline_mode<synchronous>, transform_indices = @transform_1, window_bounds = array<i64: 32, 96>}, {pipeline_mode = #tpu.pipeline_mode<synchronous>, transform_indices = @transform_2, window_bounds = array<i64: 1, 96>}, {pipeline_mode = #tpu.pipeline_mode<synchronous>, transform_indices = @transform_3, window_bounds = array<i64: 4, 8, 32>}, {pipeline_mode = #tpu.pipeline_mode<synchronous>, transform_indices = @transform_4, window_bounds = array<i64: 1, 32>}, {pipeline_mode = #tpu.pipeline_mode<synchronous>, transform_indices = @transform_5, window_bounds = array<i64: 1, 32>}, {pipeline_mode = #tpu.pipeline_mode<synchronous>, transform_indices = @transform_6, window_bounds = array<i64: 1, 32>}, {pipeline_mode = #tpu.pipeline_mode<synchronous>, transform_indices = @transform_7, window_bounds = array<i64: 32, 64>}, {pipeline_mode = #tpu.pipeline_mode<synchronous>, transform_indices = @transform_8, window_bounds = array<i64: 1, 64>}, {pipeline_mode = #tpu.pipeline_mode<synchronous>, transform_indices = @transform_9, window_bounds = array<i64: 64, 32>}, {pipeline_mode = #tpu.pipeline_mode<synchronous>, transform_indices = @transform_10, window_bounds = array<i64: 1, 32>}, {pipeline_mode = #tpu.pipeline_mode<synchronous>, transform_indices = @transform_11, window_bounds = array<i64: 1, 32>}, {pipeline_mode = #tpu.pipeline_mode<synchronous>, transform_indices = @transform_12, window_bounds = array<i64: 1, 32>}, {transform_indices = @transform_13, window_bounds = array<i64: 1, 8, 32>}]} {
    %c0 = arith.constant 0 : index
    %c0_0 = arith.constant 0 : index
    %c0_1 = arith.constant 0 : index
    %0 = vector.load %arg1[%c0, %c0_0, %c0_1] : memref<1x8x32xf32, #tpu.memory_space<vmem>>, vector<1x8x32xf32>
    %1 = vector.shape_cast %0 : vector<1x8x32xf32> to vector<8x32xf32>
    %c0_2 = arith.constant 0 : index
    %c0_3 = arith.constant 0 : index
    %2 = vector.load %arg2[%c0_2, %c0_3] : memref<32x96xf32, #tpu.memory_space<vmem>>, vector<32x96xf32>
    %cst = arith.constant dense<0.000000e+00> : vector<8x96xf32>
    %3 = tpu.matmul %1, %2, %cst {dimension_numbers = #tpu.dot_dimension_numbers<[1], [0], [0], [1], [0, 0, 1, 1], [], []>} : vector<8x32xf32>, vector<32x96xf32>, vector<8x96xf32> -> vector<8x96xf32>
    %c0_4 = arith.constant 0 : index
    %c0_5 = arith.constant 0 : index
    %4 = vector.load %arg3[%c0_4, %c0_5] : memref<1x96xf32, #tpu.memory_space<vmem>>, vector<1x96xf32>
    %5 = vector.broadcast %4 : vector<1x96xf32> to vector<8x96xf32>
    %6 = arith.addf %3, %5 : vector<8x96xf32>
    %7 = vector.extract_strided_slice %6 {offsets = [0, 0], sizes = [8, 8], strides = [1, 1]} : vector<8x96xf32> to vector<8x8xf32>
    %8 = vector.extract_strided_slice %6 {offsets = [0, 8], sizes = [8, 8], strides = [1, 1]} : vector<8x96xf32> to vector<8x8xf32>
    %9 = vector.extract_strided_slice %6 {offsets = [0, 16], sizes = [8, 8], strides = [1, 1]} : vector<8x96xf32> to vector<8x8xf32>
    %10 = vector.extract_strided_slice %6 {offsets = [0, 24], sizes = [8, 8], strides = [1, 1]} : vector<8x96xf32> to vector<8x8xf32>
    %11 = vector.shape_cast %7 : vector<8x8xf32> to vector<1x8x8xf32>
    %12 = vector.shape_cast %8 : vector<8x8xf32> to vector<1x8x8xf32>
    %13 = vector.shape_cast %9 : vector<8x8xf32> to vector<1x8x8xf32>
    %14 = vector.shape_cast %10 : vector<8x8xf32> to vector<1x8x8xf32>
    %15 = tpu.concatenate %11, %12, %13, %14 in 0 : vector<1x8x8xf32>, vector<1x8x8xf32>, vector<1x8x8xf32>, vector<1x8x8xf32> -> vector<4x8x8xf32>
    %cst_6 = arith.constant 0.353553385 : f32
    %16 = vector.broadcast %cst_6 : f32 to vector<4x8x8xf32>
    %17 = arith.mulf %15, %16 : vector<4x8x8xf32>
    %18 = vector.extract_strided_slice %6 {offsets = [0, 32], sizes = [8, 8], strides = [1, 1]} : vector<8x96xf32> to vector<8x8xf32>
    %19 = vector.extract_strided_slice %6 {offsets = [0, 40], sizes = [8, 8], strides = [1, 1]} : vector<8x96xf32> to vector<8x8xf32>
    %20 = vector.extract_strided_slice %6 {offsets = [0, 48], sizes = [8, 8], strides = [1, 1]} : vector<8x96xf32> to vector<8x8xf32>
    %21 = vector.extract_strided_slice %6 {offsets = [0, 56], sizes = [8, 8], strides = [1, 1]} : vector<8x96xf32> to vector<8x8xf32>
    %22 = vector.shape_cast %18 : vector<8x8xf32> to vector<1x8x8xf32>
    %23 = vector.shape_cast %19 : vector<8x8xf32> to vector<1x8x8xf32>
    %24 = vector.shape_cast %20 : vector<8x8xf32> to vector<1x8x8xf32>
    %25 = vector.shape_cast %21 : vector<8x8xf32> to vector<1x8x8xf32>
    %26 = tpu.concatenate %22, %23, %24, %25 in 0 : vector<1x8x8xf32>, vector<1x8x8xf32>, vector<1x8x8xf32>, vector<1x8x8xf32> -> vector<4x8x8xf32>
    %27 = vector.extract_strided_slice %6 {offsets = [0, 64], sizes = [8, 8], strides = [1, 1]} : vector<8x96xf32> to vector<8x8xf32>
    %28 = vector.extract_strided_slice %6 {offsets = [0, 72], sizes = [8, 8], strides = [1, 1]} : vector<8x96xf32> to vector<8x8xf32>
    %29 = vector.extract_strided_slice %6 {offsets = [0, 80], sizes = [8, 8], strides = [1, 1]} : vector<8x96xf32> to vector<8x8xf32>
    %30 = vector.extract_strided_slice %6 {offsets = [0, 88], sizes = [8, 8], strides = [1, 1]} : vector<8x96xf32> to vector<8x8xf32>
    %31 = vector.shape_cast %27 : vector<8x8xf32> to vector<1x8x8xf32>
    %32 = vector.shape_cast %28 : vector<8x8xf32> to vector<1x8x8xf32>
    %33 = vector.shape_cast %29 : vector<8x8xf32> to vector<1x8x8xf32>
    %34 = vector.shape_cast %30 : vector<8x8xf32> to vector<1x8x8xf32>
    %35 = tpu.concatenate %31, %32, %33, %34 in 0 : vector<1x8x8xf32>, vector<1x8x8xf32>, vector<1x8x8xf32>, vector<1x8x8xf32> -> vector<4x8x8xf32>
    "tpu.trace_start"() <{level = 10 : i32, message = "hqd,hkd->hqk"}> : () -> ()
    %cst_7 = arith.constant dense<0.000000e+00> : vector<4x8x8xf32>
    %36 = tpu.matmul %17, %26, %cst_7 {dimension_numbers = #tpu.dot_dimension_numbers<[2], [2], [1], [1], [0, 0, 0, 1, 1, 1], [0], [0]>} : vector<4x8x8xf32>, vector<4x8x8xf32>, vector<4x8x8xf32> -> vector<4x8x8xf32>
    "tpu.trace_stop"() : () -> ()
    %cst_8 = arith.constant dense<0xFF800000> : vector<4x8xf32>
    %37 = vector.multi_reduction <maximumf>, %36, %cst_8 [2] : vector<4x8x8xf32> to vector<4x8xf32>
    %38 = vector.shape_cast %37 : vector<4x8xf32> to vector<4x8x1xf32>
    %39 = vector.broadcast %38 : vector<4x8x1xf32> to vector<4x8x8xf32>
    %40 = arith.subf %36, %39 : vector<4x8x8xf32>
    %41 = math.exp %40 : vector<4x8x8xf32>
    %cst_9 = arith.constant dense<0.000000e+00> : vector<4x8xf32>
    %42 = vector.multi_reduction <add>, %41, %cst_9 [2] : vector<4x8x8xf32> to vector<4x8xf32>
    %43 = vector.shape_cast %42 : vector<4x8xf32> to vector<4x8x1xf32>
    %44 = tpu.reciprocal %43 {approx = true} : vector<4x8x1xf32> -> vector<4x8x1xf32>
    %45 = vector.broadcast %44 : vector<4x8x1xf32> to vector<4x8x8xf32>
    %46 = arith.mulf %41, %45 : vector<4x8x8xf32>
    "tpu.trace_start"() <{level = 10 : i32, message = "hqk,hkd->hqd"}> : () -> ()
    %cst_10 = arith.constant dense<0.000000e+00> : vector<4x8x8xf32>
    %47 = tpu.matmul %46, %35, %cst_10 {dimension_numbers = #tpu.dot_dimension_numbers<[2], [1], [1], [2], [0, 0, 0, 1, 1, 2], [0], [0]>} : vector<4x8x8xf32>, vector<4x8x8xf32>, vector<4x8x8xf32> -> vector<4x8x8xf32>
    "tpu.trace_stop"() : () -> ()
    %c0_11 = arith.constant 0 : index
    %c0_12 = arith.constant 0 : index
    %c0_13 = arith.constant 0 : index
    %48 = vector.load %arg4[%c0_11, %c0_12, %c0_13] : memref<4x8x32xf32, #tpu.memory_space<vmem>>, vector<4x8x32xf32>
    "tpu.trace_start"() <{level = 10 : i32, message = "hqd,hdf->hqf"}> : () -> ()
    %cst_14 = arith.constant dense<0.000000e+00> : vector<4x8x32xf32>
    %49 = tpu.matmul %47, %48, %cst_14 {dimension_numbers = #tpu.dot_dimension_numbers<[2], [1], [1], [2], [0, 0, 0, 1, 1, 2], [0], [0]>} : vector<4x8x8xf32>, vector<4x8x32xf32>, vector<4x8x32xf32> -> vector<4x8x32xf32>
    "tpu.trace_stop"() : () -> ()
    %cst_15 = arith.constant dense<0.000000e+00> : vector<8x32xf32>
    %50 = vector.multi_reduction <add>, %49, %cst_15 [0] : vector<4x8x32xf32> to vector<8x32xf32>
    %c0_16 = arith.constant 0 : index
    %c0_17 = arith.constant 0 : index
    %51 = vector.load %arg5[%c0_16, %c0_17] : memref<1x32xf32, #tpu.memory_space<vmem>>, vector<1x32xf32>
    %52 = vector.broadcast %51 : vector<1x32xf32> to vector<8x32xf32>
    %53 = arith.addf %50, %52 : vector<8x32xf32>
    %54 = arith.addf %1, %53 : vector<8x32xf32>
    %cst_18 = arith.constant dense<0.000000e+00> : vector<8xf32>
    %55 = vector.multi_reduction <add>, %54, %cst_18 [1] : vector<8x32xf32> to vector<8xf32>
    %56 = vector.shape_cast %55 : vector<8xf32> to vector<8x1xf32>
    %cst_19 = arith.constant 3.200000e+01 : f32
    %57 = vector.broadcast %cst_19 : f32 to vector<8x1xf32>
    %58 = arith.divf %56, %57 : vector<8x1xf32>
    %59 = vector.broadcast %58 : vector<8x1xf32> to vector<8x32xf32>
    %60 = arith.subf %54, %59 : vector<8x32xf32>
    %61 = arith.mulf %60, %60 : vector<8x32xf32>
    %cst_20 = arith.constant dense<0.000000e+00> : vector<8xf32>
    %62 = vector.multi_reduction <add>, %61, %cst_20 [1] : vector<8x32xf32> to vector<8xf32>
    %63 = vector.shape_cast %62 : vector<8xf32> to vector<8x1xf32>
    %cst_21 = arith.constant 3.200000e+01 : f32
    %64 = vector.broadcast %cst_21 : f32 to vector<8x1xf32>
    %65 = arith.divf %63, %64 : vector<8x1xf32>
    %66 = vector.broadcast %58 : vector<8x1xf32> to vector<8x32xf32>
    %67 = arith.subf %54, %66 : vector<8x32xf32>
    %cst_22 = arith.constant 9.99999974E-6 : f32
    %68 = vector.broadcast %cst_22 : f32 to vector<8x1xf32>
    %69 = arith.addf %65, %68 : vector<8x1xf32>
    %70 = math.rsqrt %69 : vector<8x1xf32>
    %71 = vector.broadcast %70 : vector<8x1xf32> to vector<8x32xf32>
    %72 = arith.mulf %67, %71 : vector<8x32xf32>
    %c0_23 = arith.constant 0 : index
    %c0_24 = arith.constant 0 : index
    %73 = vector.load %arg6[%c0_23, %c0_24] : memref<1x32xf32, #tpu.memory_space<vmem>>, vector<1x32xf32>
    %74 = vector.broadcast %73 : vector<1x32xf32> to vector<8x32xf32>
    %75 = arith.mulf %72, %74 : vector<8x32xf32>
    %c0_25 = arith.constant 0 : index
    %c0_26 = arith.constant 0 : index
    %76 = vector.load %arg7[%c0_25, %c0_26] : memref<1x32xf32, #tpu.memory_space<vmem>>, vector<1x32xf32>
    %77 = vector.broadcast %76 : vector<1x32xf32> to vector<8x32xf32>
    %78 = arith.addf %75, %77 : vector<8x32xf32>
    %c0_27 = arith.constant 0 : index
    %c0_28 = arith.constant 0 : index
    %79 = vector.load %arg8[%c0_27, %c0_28] : memref<32x64xf32, #tpu.memory_space<vmem>>, vector<32x64xf32>
    %cst_29 = arith.constant dense<0.000000e+00> : vector<8x64xf32>
    %80 = tpu.matmul %78, %79, %cst_29 {dimension_numbers = #tpu.dot_dimension_numbers<[1], [0], [0], [1], [0, 0, 1, 1], [], []>} : vector<8x32xf32>, vector<32x64xf32>, vector<8x64xf32> -> vector<8x64xf32>
    %c0_30 = arith.constant 0 : index
    %c0_31 = arith.constant 0 : index
    %81 = vector.load %arg9[%c0_30, %c0_31] : memref<1x64xf32, #tpu.memory_space<vmem>>, vector<1x64xf32>
    %82 = vector.broadcast %81 : vector<1x64xf32> to vector<8x64xf32>
    %83 = arith.addf %80, %82 : vector<8x64xf32>
    %cst_32 = arith.constant 0.000000e+00 : f32
    %84 = vector.broadcast %cst_32 : f32 to vector<8x64xf32>
    %85 = arith.maximumf %83, %84 : vector<8x64xf32>
    %c0_33 = arith.constant 0 : index
    %c0_34 = arith.constant 0 : index
    %86 = vector.load %arg10[%c0_33, %c0_34] : memref<64x32xf32, #tpu.memory_space<vmem>>, vector<64x32xf32>
    %cst_35 = arith.constant dense<0.000000e+00> : vector<8x32xf32>
    %87 = tpu.matmul %85, %86, %cst_35 {dimension_numbers = #tpu.dot_dimension_numbers<[1], [0], [0], [1], [0, 0, 1, 1], [], []>} : vector<8x64xf32>, vector<64x32xf32>, vector<8x32xf32> -> vector<8x32xf32>
    %c0_36 = arith.constant 0 : index
    %c0_37 = arith.constant 0 : index
    %88 = vector.load %arg11[%c0_36, %c0_37] : memref<1x32xf32, #tpu.memory_space<vmem>>, vector<1x32xf32>
    %89 = vector.broadcast %88 : vector<1x32xf32> to vector<8x32xf32>
    %90 = arith.addf %87, %89 : vector<8x32xf32>
    %91 = arith.addf %78, %90 : vector<8x32xf32>
    %cst_38 = arith.constant dense<0.000000e+00> : vector<8xf32>
    %92 = vector.multi_reduction <add>, %91, %cst_38 [1] : vector<8x32xf32> to vector<8xf32>
    %93 = vector.shape_cast %92 : vector<8xf32> to vector<8x1xf32>
    %cst_39 = arith.constant 3.200000e+01 : f32
    %94 = vector.broadcast %cst_39 : f32 to vector<8x1xf32>
    %95 = arith.divf %93, %94 : vector<8x1xf32>
    %96 = vector.broadcast %95 : vector<8x1xf32> to vector<8x32xf32>
    %97 = arith.subf %91, %96 : vector<8x32xf32>
    %98 = arith.mulf %97, %97 : vector<8x32xf32>
    %cst_40 = arith.constant dense<0.000000e+00> : vector<8xf32>
    %99 = vector.multi_reduction <add>, %98, %cst_40 [1] : vector<8x32xf32> to vector<8xf32>
    %100 = vector.shape_cast %99 : vector<8xf32> to vector<8x1xf32>
    %cst_41 = arith.constant 3.200000e+01 : f32
    %101 = vector.broadcast %cst_41 : f32 to vector<8x1xf32>
    %102 = arith.divf %100, %101 : vector<8x1xf32>
    %103 = vector.broadcast %95 : vector<8x1xf32> to vector<8x32xf32>
    %104 = arith.subf %91, %103 : vector<8x32xf32>
    %cst_42 = arith.constant 9.99999974E-6 : f32
    %105 = vector.broadcast %cst_42 : f32 to vector<8x1xf32>
    %106 = arith.addf %102, %105 : vector<8x1xf32>
    %107 = math.rsqrt %106 : vector<8x1xf32>
    %108 = vector.broadcast %107 : vector<8x1xf32> to vector<8x32xf32>
    %109 = arith.mulf %104, %108 : vector<8x32xf32>
    %c0_43 = arith.constant 0 : index
    %c0_44 = arith.constant 0 : index
    %110 = vector.load %arg12[%c0_43, %c0_44] : memref<1x32xf32, #tpu.memory_space<vmem>>, vector<1x32xf32>
    %111 = vector.broadcast %110 : vector<1x32xf32> to vector<8x32xf32>
    %112 = arith.mulf %109, %111 : vector<8x32xf32>
    %c0_45 = arith.constant 0 : index
    %c0_46 = arith.constant 0 : index
    %113 = vector.load %arg13[%c0_45, %c0_46] : memref<1x32xf32, #tpu.memory_space<vmem>>, vector<1x32xf32>
    %114 = vector.broadcast %113 : vector<1x32xf32> to vector<8x32xf32>
    %115 = arith.addf %112, %114 : vector<8x32xf32>
    %c0_47 = arith.constant 0 : index
    %c0_48 = arith.constant 0 : index
    %c0_49 = arith.constant 0 : index
    %116 = vector.load %arg14[%c0_47, %c0_48, %c0_49] : memref<1x8x32xf32, #tpu.memory_space<vmem>>, vector<1x8x32xf32>
    %117 = vector.shape_cast %116 : vector<1x8x32xf32> to vector<8x32xf32>
    %118 = vector.shape_cast %115 : vector<8x32xf32> to vector<1x8x32xf32>
    tpu.vector_store %arg14[%c0_47, %c0_48, %c0_49], %118 {strides = array<i32>} : memref<1x8x32xf32, #tpu.memory_space<vmem>>, vector<1x8x32xf32>,
    return
  }
  func.func @transform_0(%arg0: i32) -> (i32, i32, i32) {
    %c0_i32 = arith.constant 0 : i32
    %c0_i32_0 = arith.constant 0 : i32
    %c0_i32_1 = arith.constant 0 : i32
    return %arg0, %c0_i32, %c0_i32_0 : i32, i32, i32
  }
  func.func @transform_1(%arg0: i32) -> (i32, i32) {
    %c0_i32 = arith.constant 0 : i32
    %c0_i32_0 = arith.constant 0 : i32
    %c0_i32_1 = arith.constant 0 : i32
    return %c0_i32, %c0_i32_0 : i32, i32
  }
  func.func @transform_2(%arg0: i32) -> (i32, i32) {
    %c0_i32 = arith.constant 0 : i32
    %c0_i32_0 = arith.constant 0 : i32
    %c0_i32_1 = arith.constant 0 : i32
    return %c0_i32, %c0_i32_0 : i32, i32
  }
  func.func @transform_3(%arg0: i32) -> (i32, i32, i32) {
    %c0_i32 = arith.constant 0 : i32
    %c0_i32_0 = arith.constant 0 : i32
    %c0_i32_1 = arith.constant 0 : i32
    %c0_i32_2 = arith.constant 0 : i32
    return %c0_i32, %c0_i32_0, %c0_i32_1 : i32, i32, i32
  }
  func.func @transform_4(%arg0: i32) -> (i32, i32) {
    %c0_i32 = arith.constant 0 : i32
    %c0_i32_0 = arith.constant 0 : i32
    %c0_i32_1 = arith.constant 0 : i32
    return %c0_i32, %c0_i32_0 : i32, i32
  }
  func.func @transform_5(%arg0: i32) -> (i32, i32) {
    %c0_i32 = arith.constant 0 : i32
    %c0_i32_0 = arith.constant 0 : i32
    %c0_i32_1 = arith.constant 0 : i32
    return %c0_i32, %c0_i32_0 : i32, i32
  }
  func.func @transform_6(%arg0: i32) -> (i32, i32) {
    %c0_i32 = arith.constant 0 : i32
    %c0_i32_0 = arith.constant 0 : i32
    %c0_i32_1 = arith.constant 0 : i32
    return %c0_i32, %c0_i32_0 : i32, i32
  }
  func.func @transform_7(%arg0: i32) -> (i32, i32) {
    %c0_i32 = arith.constant 0 : i32
    %c0_i32_0 = arith.constant 0 : i32
    %c0_i32_1 = arith.constant 0 : i32
    return %c0_i32, %c0_i32_0 : i32, i32
  }
  func.func @transform_8(%arg0: i32) -> (i32, i32) {
    %c0_i32 = arith.constant 0 : i32
    %c0_i32_0 = arith.constant 0 : i32
    %c0_i32_1 = arith.constant 0 : i32
    return %c0_i32, %c0_i32_0 : i32, i32
  }
  func.func @transform_9(%arg0: i32) -> (i32, i32) {
    %c0_i32 = arith.constant 0 : i32
    %c0_i32_0 = arith.constant 0 : i32
    %c0_i32_1 = arith.constant 0 : i32
    return %c0_i32, %c0_i32_0 : i32, i32
  }
  func.func @transform_10(%arg0: i32) -> (i32, i32) {
    %c0_i32 = arith.constant 0 : i32
    %c0_i32_0 = arith.constant 0 : i32
    %c0_i32_1 = arith.constant 0 : i32
    return %c0_i32, %c0_i32_0 : i32, i32
  }
  func.func @transform_11(%arg0: i32) -> (i32, i32) {
    %c0_i32 = arith.constant 0 : i32
    %c0_i32_0 = arith.constant 0 : i32
    %c0_i32_1 = arith.constant 0 : i32
    return %c0_i32, %c0_i32_0 : i32, i32
  }
  func.func @transform_12(%arg0: i32) -> (i32, i32) {
    %c0_i32 = arith.constant 0 : i32
    %c0_i32_0 = arith.constant 0 : i32
    %c0_i32_1 = arith.constant 0 : i32
    return %c0_i32, %c0_i32_0 : i32, i32
  }
  func.func @transform_13(%arg0: i32) -> (i32, i32, i32) {
    %c0_i32 = arith.constant 0 : i32
    %c0_i32_0 = arith.constant 0 : i32
    %c0_i32_1 = arith.constant 0 : i32
    return %arg0, %c0_i32, %c0_i32_0 : i32, i32, i32
  }
}

</mosaic_0001>

<llo_original>
// kernel: tpu_custom_call.1
$region0: #{tpu_custom_call.1}
  #allocation0 [shape = 'u32[]', space=smem, size = 0x4, offset = 0x4, fixed_abs, tag = 'smem constant byte address 0x4 - core index']
  #allocation1 [shape = 'u32[144,128]{1,0:T(1,128)}', space=vmem, size = 0x12000, scoped, tag = 'internal scratch']
  %s0 = inlined_call_operand.hbm [shape: f32[2,8,32], index: 0, kind: input, shape index: {}]
  %s1 = inlined_call_operand.vmem [shape: f32[32,96], index: 1, kind: input, shape index: {}]
  %s2 = inlined_call_operand.vmem [shape: f32[1,96], index: 2, kind: input, shape index: {}]
  %s3 = inlined_call_operand.vmem [shape: f32[4,8,32], index: 3, kind: input, shape index: {}]
  %s4 = inlined_call_operand.vmem [shape: f32[1,32], index: 4, kind: input, shape index: {}]
  %s5 = inlined_call_operand.vmem [shape: f32[1,32], index: 5, kind: input, shape index: {}]
  %s6 = inlined_call_operand.vmem [shape: f32[1,32], index: 6, kind: input, shape index: {}]
  %s7 = inlined_call_operand.vmem [shape: f32[32,64], index: 7, kind: input, shape index: {}]
  %s8 = inlined_call_operand.vmem [shape: f32[1,64], index: 8, kind: input, shape index: {}]
  %s9 = inlined_call_operand.vmem [shape: f32[64,32], index: 9, kind: input, shape index: {}]
  %s10 = inlined_call_operand.vmem [shape: f32[1,32], index: 10, kind: input, shape index: {}]
  %s11 = inlined_call_operand.vmem [shape: f32[1,32], index: 11, kind: input, shape index: {}]
  %s12 = inlined_call_operand.vmem [shape: f32[1,32], index: 12, kind: input, shape index: {}]
  %s13 = inlined_call_operand.hbm [shape: f32[2,8,32], index: 13, kind: output, shape index: {}]
  %s14 = sld [smem:[#allocation0]]
  $region89: #{tpu_custom_call.1} parent=0
    _
  %s16 = ssub.s32 1, %s14
  %s17 = scalar_select 0, %s16, %s14
  $region1: #{tpu_custom_call.1} parent=0
    #allocation2 [shape = 'u8[8192]{0}', space=vmem, size = 0x2000, scoped, tag = 'input window, operand 0']
    #allocation3 [shape = 's32[2]{0}', space=sflag, size = 0x8, scoped, tag = 'scoped memory for tpu_custom_call.1']
    #allocation4 [shape = 's32[2]{0}', space=sflag, size = 0x8, scoped, tag = 'scoped memory for tpu_custom_call.1']
    #allocation5 [shape = 'u8[8192]{0}', space=vmem, size = 0x2000, scoped, tag = 'output window, operand 0']
    %18 = vsyncpa [#allocation3], 0
    %s19 = scalar_lea.sflag [#allocation3], 1
    %20 = vsyncpa %s19, 0
    %21 = vsyncpa [#allocation4], 0
    %s22 = scalar_lea.sflag [#allocation4], 1
    %23 = vsyncpa %s22, 0
    loop: start=0, step=1, limit=4
    $region2: #{tpu_custom_call.1} parent=1 // loop_pre_header
      _
    $region3: #{tpu_custom_call.1} parent=1 // loop_header
      %s25 = sphi 0, %s29
      %p26 = scmp.ge.s32.totalorder %s25, 4
      %s35 = sphi 0, %s37
      %s38 = sphi 0, %s35
      %s39 = sphi 0, %s38
      %s55 = sphi 0, %s39
      %s59 = sphi 0, %s59
      %s61 = sphi 0, %s59
      %s62 = sphi 0, %s61
      %s76 = sphi 0, %s62
      %s80 = sphi 0, %s80
      %s82 = sphi 0, %s80
      %s83 = sphi 0, %s82
      %s97 = sphi 0, %s83
      %s101 = sphi 0, %s101
      %s103 = sphi 0, %s101
      %s104 = sphi 0, %s103
      %s118 = sphi 0, %s104
      %s122 = sphi 0, %s122
      %s124 = sphi 0, %s122
      %s125 = sphi 0, %s124
      %s139 = sphi 0, %s125
      %s143 = sphi 0, %s143
      %s145 = sphi 0, %s143
      %s146 = sphi 0, %s145
      %s160 = sphi 0, %s146
      %s164 = sphi 0, %s164
      %s166 = sphi 0, %s164
      %s167 = sphi 0, %s166
      %s181 = sphi 0, %s167
      %s185 = sphi 0, %s185
      %s187 = sphi 0, %s185
      %s188 = sphi 0, %s187
      %s202 = sphi 0, %s188
      %s206 = sphi 0, %s206
      %s208 = sphi 0, %s206
      %s209 = sphi 0, %s208
      %s223 = sphi 0, %s209
      %s227 = sphi 0, %s227
      %s229 = sphi 0, %s227
      %s230 = sphi 0, %s229
      %s244 = sphi 0, %s230
      %s248 = sphi 0, %s248
      %s250 = sphi 0, %s248
      %s251 = sphi 0, %s250
      %s265 = sphi 0, %s251
      %s269 = sphi 0, %s269
      %s271 = sphi 0, %s269
      %s272 = sphi 0, %s271
      %s286 = sphi 0, %s272
      %s290 = sphi 0, %s290
      %s292 = sphi 0, %s290
      %s293 = sphi 0, %s292
      %s307 = sphi 0, %s293
      %s313 = sphi 0, %s315
      %s316 = sphi 0, %s313
      %s317 = sphi 0, %s316
      %s333 = sphi 0, %s317
    $region4: #{tpu_custom_call.1} parent=1 // loop_header_branch
      %28 = sbr.rel (%p26) target = $region8
    $region5: #{tpu_custom_call.1} parent=1 // loop_body
      %s30 = ssub.s32 %s25, 1
      %s31 = ssub.s32 %s25, 2
      %s32 = sadd.s32 %s25, 1
      %s33 = ssub.s32 %s25, %s32
      %p34 = scmp.eq.s32.totalorder %s33, 0
      %s36 = sadd.s32 %s35, 1
      %s37 = scalar_select %p34, %s35, %s36
      %p40 = pneg %p34
      %p41 = scmp.eq.s32.totalorder %s25, 1
      %p42 = por %p40, %p41
      %p43 = scmp.ne.s32.totalorder %s35, %s38
      %p44 = scmp.eq.s32.totalorder %s25, 0
      %p45 = por %p43, %p44
      %p46 = scmp.ne.s32.totalorder %s35, %s38
      %p47 = scmp.eq.s32.totalorder %s30, 1
      %p48 = por %p46, %p47
      %p49 = scmp.ne.s32.totalorder %s38, %s39
      %p50 = scmp.eq.s32.totalorder %s30, 0
      %p51 = por %p49, %p50
      %p52 = scmp.ne.s32.totalorder %s38, %s39
      %p53 = scmp.eq.s32.totalorder %s31, 1
      %p54 = por %p52, %p53
      %p56 = scmp.ne.s32.totalorder %s39, %s55
      %p57 = scmp.eq.s32.totalorder %s31, 0
      %p58 = por %p56, %p57
      %s60 = sadd.s32 %s59, 1
      %p63 = scmp.eq.s32.totalorder %s25, 1
      %p64 = scmp.ne.s32.totalorder %s59, %s61
      %p65 = scmp.eq.s32.totalorder %s25, 0
      %p66 = por %p64, %p65
      %p67 = scmp.ne.s32.totalorder %s59, %s61
      %p68 = scmp.eq.s32.totalorder %s30, 1
      %p69 = por %p67, %p68
      %p70 = scmp.ne.s32.totalorder %s61, %s62
      %p71 = scmp.eq.s32.totalorder %s30, 0
      %p72 = por %p70, %p71
      %p73 = scmp.ne.s32.totalorder %s61, %s62
      %p74 = scmp.eq.s32.totalorder %s31, 1
      %p75 = por %p73, %p74
      %p77 = scmp.ne.s32.totalorder %s62, %s76
      %p78 = scmp.eq.s32.totalorder %s31, 0
      %p79 = por %p77, %p78
      %s81 = sadd.s32 %s80, 1
      %p84 = scmp.eq.s32.totalorder %s25, 1
      %p85 = scmp.ne.s32.totalorder %s80, %s82
      %p86 = scmp.eq.s32.totalorder %s25, 0
      %p87 = por %p85, %p86
      %p88 = scmp.ne.s32.totalorder %s80, %s82
      %p89 = scmp.eq.s32.totalorder %s30, 1
      %p90 = por %p88, %p89
      %p91 = scmp.ne.s32.totalorder %s82, %s83
      %p92 = scmp.eq.s32.totalorder %s30, 0
      %p93 = por %p91, %p92
      %p94 = scmp.ne.s32.totalorder %s82, %s83
      %p95 = scmp.eq.s32.totalorder %s31, 1
      %p96 = por %p94, %p95
      %p98 = scmp.ne.s32.totalorder %s83, %s97
      %p99 = scmp.eq.s32.totalorder %s31, 0
      %p100 = por %p98, %p99
      %s102 = sadd.s32 %s101, 1
      %p105 = scmp.eq.s32.totalorder %s25, 1
      %p106 = scmp.ne.s32.totalorder %s101, %s103
      %p107 = scmp.eq.s32.totalorder %s25, 0
      %p108 = por %p106, %p107
      %p109 = scmp.ne.s32.totalorder %s101, %s103
      %p110 = scmp.eq.s32.totalorder %s30, 1
      %p111 = por %p109, %p110
      %p112 = scmp.ne.s32.totalorder %s103, %s104
      %p113 = scmp.eq.s32.totalorder %s30, 0
      %p114 = por %p112, %p113
      %p115 = scmp.ne.s32.totalorder %s103, %s104
      %p116 = scmp.eq.s32.totalorder %s31, 1
      %p117 = por %p115, %p116
      %p119 = scmp.ne.s32.totalorder %s104, %s118
      %p120 = scmp.eq.s32.totalorder %s31, 0
      %p121 = por %p119, %p120
      %s123 = sadd.s32 %s122, 1
      %p126 = scmp.eq.s32.totalorder %s25, 1
      %p127 = scmp.ne.s32.totalorder %s122, %s124
      %p128 = scmp.eq.s32.totalorder %s25, 0
      %p129 = por %p127, %p128
      %p130 = scmp.ne.s32.totalorder %s122, %s124
      %p131 = scmp.eq.s32.totalorder %s30, 1
      %p132 = por %p130, %p131
      %p133 = scmp.ne.s32.totalorder %s124, %s125
      %p134 = scmp.eq.s32.totalorder %s30, 0
      %p135 = por %p133, %p134
      %p136 = scmp.ne.s32.totalorder %s124, %s125
      %p137 = scmp.eq.s32.totalorder %s31, 1
      %p138 = por %p136, %p137
      %p140 = scmp.ne.s32.totalorder %s125, %s139
      %p141 = scmp.eq.s32.totalorder %s31, 0
      %p142 = por %p140, %p141
      %s144 = sadd.s32 %s143, 1
      %p147 = scmp.eq.s32.totalorder %s25, 1
      %p148 = scmp.ne.s32.totalorder %s143, %s145
      %p149 = scmp.eq.s32.totalorder %s25, 0
      %p150 = por %p148, %p149
      %p151 = scmp.ne.s32.totalorder %s143, %s145
      %p152 = scmp.eq.s32.totalorder %s30, 1
      %p153 = por %p151, %p152
      %p154 = scmp.ne.s32.totalorder %s145, %s146
      %p155 = scmp.eq.s32.totalorder %s30, 0
      %p156 = por %p154, %p155
      %p157 = scmp.ne.s32.totalorder %s145, %s146
      %p158 = scmp.eq.s32.totalorder %s31, 1
      %p159 = por %p157, %p158
      %p161 = scmp.ne.s32.totalorder %s146, %s160
      %p162 = scmp.eq.s32.totalorder %s31, 0
      %p163 = por %p161, %p162
      %s165 = sadd.s32 %s164, 1
      %p168 = scmp.eq.s32.totalorder %s25, 1
      %p169 = scmp.ne.s32.totalorder %s164, %s166
      %p170 = scmp.eq.s32.totalorder %s25, 0
      %p171 = por %p169, %p170
      %p172 = scmp.ne.s32.totalorder %s164, %s166
      %p173 = scmp.eq.s32.totalorder %s30, 1
      %p174 = por %p172, %p173
      %p175 = scmp.ne.s32.totalorder %s166, %s167
      %p176 = scmp.eq.s32.totalorder %s30, 0
      %p177 = por %p175, %p176
      %p178 = scmp.ne.s32.totalorder %s166, %s167
      %p179 = scmp.eq.s32.totalorder %s31, 1
      %p180 = por %p178, %p179
      %p182 = scmp.ne.s32.totalorder %s167, %s181
      %p183 = scmp.eq.s32.totalorder %s31, 0
      %p184 = por %p182, %p183
      %s186 = sadd.s32 %s185, 1
      %p189 = scmp.eq.s32.totalorder %s25, 1
      %p190 = scmp.ne.s32.totalorder %s185, %s187
      %p191 = scmp.eq.s32.totalorder %s25, 0
      %p192 = por %p190, %p191
      %p193 = scmp.ne.s32.totalorder %s185, %s187
      %p194 = scmp.eq.s32.totalorder %s30, 1
      %p195 = por %p193, %p194
      %p196 = scmp.ne.s32.totalorder %s187, %s188
      %p197 = scmp.eq.s32.totalorder %s30, 0
      %p198 = por %p196, %p197
      %p199 = scmp.ne.s32.totalorder %s187, %s188
      %p200 = scmp.eq.s32.totalorder %s31, 1
      %p201 = por %p199, %p200
      %p203 = scmp.ne.s32.totalorder %s188, %s202
      %p204 = scmp.eq.s32.totalorder %s31, 0
      %p205 = por %p203, %p204
      %s207 = sadd.s32 %s206, 1
      %p210 = scmp.eq.s32.totalorder %s25, 1
      %p211 = scmp.ne.s32.totalorder %s206, %s208
      %p212 = scmp.eq.s32.totalorder %s25, 0
      %p213 = por %p211, %p212
      %p214 = scmp.ne.s32.totalorder %s206, %s208
      %p215 = scmp.eq.s32.totalorder %s30, 1
      %p216 = por %p214, %p215
      %p217 = scmp.ne.s32.totalorder %s208, %s209
      %p218 = scmp.eq.s32.totalorder %s30, 0
      %p219 = por %p217, %p218
      %p220 = scmp.ne.s32.totalorder %s208, %s209
      %p221 = scmp.eq.s32.totalorder %s31, 1
      %p222 = por %p220, %p221
      %p224 = scmp.ne.s32.totalorder %s209, %s223
      %p225 = scmp.eq.s32.totalorder %s31, 0
      %p226 = por %p224, %p225
      %s228 = sadd.s32 %s227, 1
      %p231 = scmp.eq.s32.totalorder %s25, 1
      %p232 = scmp.ne.s32.totalorder %s227, %s229
      %p233 = scmp.eq.s32.totalorder %s25, 0
      %p234 = por %p232, %p233
      %p235 = scmp.ne.s32.totalorder %s227, %s229
      %p236 = scmp.eq.s32.totalorder %s30, 1
      %p237 = por %p235, %p236
      %p238 = scmp.ne.s32.totalorder %s229, %s230
      %p239 = scmp.eq.s32.totalorder %s30, 0
      %p240 = por %p238, %p239
      %p241 = scmp.ne.s32.totalorder %s229, %s230
      %p242 = scmp.eq.s32.totalorder %s31, 1
      %p243 = por %p241, %p242
      %p245 = scmp.ne.s32.totalorder %s230, %s244
      %p246 = scmp.eq.s32.totalorder %s31, 0
      %p247 = por %p245, %p246
      %s249 = sadd.s32 %s248, 1
      %p252 = scmp.eq.s32.totalorder %s25, 1
      %p253 = scmp.ne.s32.totalorder %s248, %s250
      %p254 = scmp.eq.s32.totalorder %s25, 0
      %p255 = por %p253, %p254
      %p256 = scmp.ne.s32.totalorder %s248, %s250
      %p257 = scmp.eq.s32.totalorder %s30, 1
      %p258 = por %p256, %p257
      %p259 = scmp.ne.s32.totalorder %s250, %s251
      %p260 = scmp.eq.s32.totalorder %s30, 0
      %p261 = por %p259, %p260
      %p262 = scmp.ne.s32.totalorder %s250, %s251
      %p263 = scmp.eq.s32.totalorder %s31, 1
      %p264 = por %p262, %p263
      %p266 = scmp.ne.s32.totalorder %s251, %s265
      %p267 = scmp.eq.s32.totalorder %s31, 0
      %p268 = por %p266, %p267
      %s270 = sadd.s32 %s269, 1
      %p273 = scmp.eq.s32.totalorder %s25, 1
      %p274 = scmp.ne.s32.totalorder %s269, %s271
      %p275 = scmp.eq.s32.totalorder %s25, 0
      %p276 = por %p274, %p275
      %p277 = scmp.ne.s32.totalorder %s269, %s271
      %p278 = scmp.eq.s32.totalorder %s30, 1
      %p279 = por %p277, %p278
      %p280 = scmp.ne.s32.totalorder %s271, %s272
      %p281 = scmp.eq.s32.totalorder %s30, 0
      %p282 = por %p280, %p281
      %p283 = scmp.ne.s32.totalorder %s271, %s272
      %p284 = scmp.eq.s32.totalorder %s31, 1
      %p285 = por %p283, %p284
      %p287 = scmp.ne.s32.totalorder %s272, %s286
      %p288 = scmp.eq.s32.totalorder %s31, 0
      %p289 = por %p287, %p288
      %s291 = sadd.s32 %s290, 1
      %p294 = scmp.eq.s32.totalorder %s25, 1
      %p295 = scmp.ne.s32.totalorder %s290, %s292
      %p296 = scmp.eq.s32.totalorder %s25, 0
      %p297 = por %p295, %p296
      %p298 = scmp.ne.s32.totalorder %s290, %s292
      %p299 = scmp.eq.s32.totalorder %s30, 1
      %p300 = por %p298, %p299
      %p301 = scmp.ne.s32.totalorder %s292, %s293
      %p302 = scmp.eq.s32.totalorder %s30, 0
      %p303 = por %p301, %p302
      %p304 = scmp.ne.s32.totalorder %s292, %s293
      %p305 = scmp.eq.s32.totalorder %s31, 1
      %p306 = por %p304, %p305
      %p308 = scmp.ne.s32.totalorder %s293, %s307
      %p309 = scmp.eq.s32.totalorder %s31, 0
      %p310 = por %p308, %p309
      %s311 = ssub.s32 %s25, %s32
      %p312 = scmp.eq.s32.totalorder %s311, 0
      %s314 = sadd.s32 %s313, 1
      %s315 = scalar_select %p312, %s313, %s314
      %p318 = pneg %p312
      %p319 = scmp.eq.s32.totalorder %s25, 1
      %p320 = por %p318, %p319
      %p321 = scmp.ne.s32.totalorder %s313, %s316
      %p322 = scmp.eq.s32.totalorder %s25, 0
      %p323 = por %p321, %p322
      %p324 = scmp.ne.s32.totalorder %s313, %s316
      %p325 = scmp.eq.s32.totalorder %s30, 1
      %p326 = por %p324, %p325
      %p327 = scmp.ne.s32.totalorder %s316, %s317
      %p328 = scmp.eq.s32.totalorder %s30, 0
      %p329 = por %p327, %p328
      %p330 = scmp.ne.s32.totalorder %s316, %s317
      %p331 = scmp.eq.s32.totalorder %s31, 1
      %p332 = por %p330, %p331
      %p334 = scmp.ne.s32.totalorder %s317, %s333
      %p335 = scmp.eq.s32.totalorder %s31, 0
      %p336 = por %p334, %p335
      %p337 = scmp.le.s32.totalorder 1, %s25
      %p338 = scmp.lt.s32.totalorder %s25, 3
      %p339 = pnand %p337, %p338
      %p340 = pneg %p339
      // Predicated region
      $region9: #{tpu_custom_call.1} parent=5 // pred_check
        _
      $region10: #{tpu_custom_call.1} parent=5 // pred_check_branch
        %342 = sbr.rel (%p339) target = $region12
      $region11: #{tpu_custom_call.1} parent=5 // pred_region
        %s343 = ssub.s32 %s25, 1
        // Predicated region
        $region13: #{tpu_custom_call.1} parent=11 // pred_check
          %p344 = pneg %p72
        $region14: #{tpu_custom_call.1} parent=11 // pred_check_branch
          %346 = sbr.rel (%p344) target = $region16
        $region15: #{tpu_custom_call.1} parent=11 // pred_region
          _
        $region16: #{tpu_custom_call.1} parent=11 // pred_fallthru
          _
        // Predicated region
        $region17: #{tpu_custom_call.1} parent=11 // pred_check
          %p347 = pneg %p93
        $region18: #{tpu_custom_call.1} parent=11 // pred_check_branch
          %349 = sbr.rel (%p347) target = $region20
        $region19: #{tpu_custom_call.1} parent=11 // pred_region
          _
        $region20: #{tpu_custom_call.1} parent=11 // pred_fallthru
          _
        // Predicated region
        $region21: #{tpu_custom_call.1} parent=11 // pred_check
          %p350 = pneg %p114
        $region22: #{tpu_custom_call.1} parent=11 // pred_check_branch
          %352 = sbr.rel (%p350) target = $region24
        $region23: #{tpu_custom_call.1} parent=11 // pred_region
          _
        $region24: #{tpu_custom_call.1} parent=11 // pred_fallthru
          _
        // Predicated region
        $region25: #{tpu_custom_call.1} parent=11 // pred_check
          %p353 = pneg %p135
        $region26: #{tpu_custom_call.1} parent=11 // pred_check_branch
          %355 = sbr.rel (%p353) target = $region28
        $region27: #{tpu_custom_call.1} parent=11 // pred_region
          _
        $region28: #{tpu_custom_call.1} parent=11 // pred_fallthru
          _
        // Predicated region
        $region29: #{tpu_custom_call.1} parent=11 // pred_check
          %p356 = pneg %p156
        $region30: #{tpu_custom_call.1} parent=11 // pred_check_branch
          %358 = sbr.rel (%p356) target = $region32
        $region31: #{tpu_custom_call.1} parent=11 // pred_region
          _
        $region32: #{tpu_custom_call.1} parent=11 // pred_fallthru
          _
        // Predicated region
        $region33: #{tpu_custom_call.1} parent=11 // pred_check
          %p359 = pneg %p177
        $region34: #{tpu_custom_call.1} parent=11 // pred_check_branch
          %361 = sbr.rel (%p359) target = $region36
        $region35: #{tpu_custom_call.1} parent=11 // pred_region
          _
        $region36: #{tpu_custom_call.1} parent=11 // pred_fallthru
          _
        // Predicated region
        $region37: #{tpu_custom_call.1} parent=11 // pred_check
          %p362 = pneg %p198
        $region38: #{tpu_custom_call.1} parent=11 // pred_check_branch
          %364 = sbr.rel (%p362) target = $region40
        $region39: #{tpu_custom_call.1} parent=11 // pred_region
          _
        $region40: #{tpu_custom_call.1} parent=11 // pred_fallthru
          _
        // Predicated region
        $region41: #{tpu_custom_call.1} parent=11 // pred_check
          %p365 = pneg %p219
        $region42: #{tpu_custom_call.1} parent=11 // pred_check_branch
          %367 = sbr.rel (%p365) target = $region44
        $region43: #{tpu_custom_call.1} parent=11 // pred_region
          _
        $region44: #{tpu_custom_call.1} parent=11 // pred_fallthru
          _
        // Predicated region
        $region45: #{tpu_custom_call.1} parent=11 // pred_check
          %p368 = pneg %p240
        $region46: #{tpu_custom_call.1} parent=11 // pred_check_branch
          %370 = sbr.rel (%p368) target = $region48
        $region47: #{tpu_custom_call.1} parent=11 // pred_region
          _
        $region48: #{tpu_custom_call.1} parent=11 // pred_fallthru
          _
        // Predicated region
        $region49: #{tpu_custom_call.1} parent=11 // pred_check
          %p371 = pneg %p261
        $region50: #{tpu_custom_call.1} parent=11 // pred_check_branch
          %373 = sbr.rel (%p371) target = $region52
        $region51: #{tpu_custom_call.1} parent=11 // pred_region
          _
        $region52: #{tpu_custom_call.1} parent=11 // pred_fallthru
          _
        // Predicated region
        $region53: #{tpu_custom_call.1} parent=11 // pred_check
          %p374 = pneg %p282
        $region54: #{tpu_custom_call.1} parent=11 // pred_check_branch
          %376 = sbr.rel (%p374) target = $region56
        $region55: #{tpu_custom_call.1} parent=11 // pred_region
          _
        $region56: #{tpu_custom_call.1} parent=11 // pred_fallthru
          _
        // Predicated region
        $region57: #{tpu_custom_call.1} parent=11 // pred_check
          %p377 = pneg %p303
        $region58: #{tpu_custom_call.1} parent=11 // pred_check_branch
          %379 = sbr.rel (%p377) target = $region60
        $region59: #{tpu_custom_call.1} parent=11 // pred_region
          _
        $region60: #{tpu_custom_call.1} parent=11 // pred_fallthru
          _
      $region12: #{tpu_custom_call.1} parent=5 // pred_fallthru
        _
      %p380 = scmp.lt.s32.totalorder %s25, 2
      // Predicated region
      $region61: #{tpu_custom_call.1} parent=5 // pred_check
        %p381 = pneg %p380
      $region62: #{tpu_custom_call.1} parent=5 // pred_check_branch
        %383 = sbr.rel (%p381) target = $region64
      $region63: #{tpu_custom_call.1} parent=5 // pred_region
        // Predicated region
        $region65: #{tpu_custom_call.1} parent=63 // pred_check
          %p384 = pneg %p45
        $region66: #{tpu_custom_call.1} parent=63 // pred_check_branch
          %386 = sbr.rel (%p384) target = $region68
        $region67: #{tpu_custom_call.1} parent=63 // pred_region
          %s387 = sand.u32 %s35, 1
          %s388 = scalar_lea.sflag [#allocation3], %s387
          %s389 = sand.u32 %s35, 1
          %s390 = smul.addr %s389, 8
          %s391 = scalar_lea.vmem [#allocation2], %s390
          %s393 = ssub.s32 128, 128
          %394 = vsyncadd %s388, %s393
          %s395 = smul.addr %s25, 128
          %s396 = scalar_lea.hbm %s0, %s395
          %s398 = sshll.u32 %s391, 4
          %s399 = int_to_ptr.vmem [resolvable:$true] %s398
          %401 = dma.hbm_to_vmem [thread:$0]  %s396, 128, %s399, %s388
        $region68: #{tpu_custom_call.1} parent=63 // pred_fallthru
          _
      $region64: #{tpu_custom_call.1} parent=5 // pred_fallthru
        _
      %p402 = scmp.le.s32.totalorder 1, %s25
      %p403 = scmp.lt.s32.totalorder %s25, 3
      %p404 = pnand %p402, %p403
      %p405 = pneg %p404
      // Predicated region
      $region69: #{tpu_custom_call.1} parent=5 // pred_check
        _
      $region70: #{tpu_custom_call.1} parent=5 // pred_check_branch
        %407 = sbr.rel (%p404) target = $region72
      $region71: #{tpu_custom_call.1} parent=5 // pred_region
        %s408 = ssub.s32 %s25, 1
        %s409 = sand.u32 %s38, 1
        %s410 = scalar_lea.sflag [#allocation3], %s409
        %s411 = sand.u32 %s38, 1
        %s412 = smul.addr %s411, 8
        %s413 = scalar_lea.vmem [#allocation2], %s412
        // Predicated region
        $region73: #{tpu_custom_call.1} parent=71 // pred_check
          %p414 = pneg %p51
        $region74: #{tpu_custom_call.1} parent=71 // pred_check_branch
          %416 = sbr.rel (%p414) target = $region76
        $region75: #{tpu_custom_call.1} parent=71 // pred_region
          %417 = dma.done %s410, 128
        $region76: #{tpu_custom_call.1} parent=71 // pred_fallthru
          _
        %s418 = sand.u32 %s38, 1
        %s419 = scalar_lea.sflag [#allocation3], %s418
        %s420 = sand.u32 %s38, 1
        %s421 = smul.addr %s420, 8
        %s422 = scalar_lea.vmem [#allocation2], %s421
        %p423 = pneg %p51
        %p424 = pneg %p48
        %p425 = pneg %p72
        %p426 = pneg %p69
        %p427 = pneg %p93
        %p428 = pneg %p90
        %p429 = pneg %p114
        %p430 = pneg %p111
        %p431 = pneg %p135
        %p432 = pneg %p132
        %p433 = pneg %p156
        %p434 = pneg %p153
        %p435 = pneg %p177
        %p436 = pneg %p174
        %p437 = pneg %p198
        %p438 = pneg %p195
        %p439 = pneg %p219
        %p440 = pneg %p216
        %p441 = pneg %p240
        %p442 = pneg %p237
        %p443 = pneg %p261
        %p444 = pneg %p258
        %p445 = pneg %p282
        %p446 = pneg %p279
        %p447 = pneg %p303
        %p448 = pneg %p300
        %p449 = pneg %p329
        %p450 = pneg %p326
        %s451 = sand.u32 %s316, 1
        %s452 = scalar_lea.sflag [#allocation4], %s451
        %s453 = sand.u32 %s316, 1
        %s454 = smul.addr %s453, 8
        %s455 = scalar_lea.vmem [#allocation5], %s454
        %v456 = vld [vmem:[%s413] sm:$0xff]
        %v457 = vld [vmem:[%s1] sm:$0xff]
        %v458 = vld [vmem:[%s1 + $0x8] sm:$0xff]
        %v459 = vld [vmem:[%s1 + $0x10] sm:$0xff]
        %v460 = vld [vmem:[%s1 + $0x18] sm:$0xff]
        %v461 = vld [vmem:[%s2] sm:$0x1]
        %v463 = vlaneseq
        %v464 = vshrl.u32 %v463, 7
        %v465 = vsub.s32 0, %v464
        %v466 = vrot.slane %v461, %v465
        %vm468 = vcmask 261120
        %v470 = vsel %vm468, %v456, 0
        %472 = vmatprep.subr.mxu0 0.0
        %473 = vmatpush1.msra.mxu0 0.0
        %474 = vmatprep.subr.mxu0 0.0
        %475 = vmatpush1.msra.mxu0 0.0
        %476 = vmatprep.subr.mxu0 0.0
        %477 = vmatpush1.msra.mxu0 0.0
        %478 = vmatprep.subr.mxu0 0.0
        %479 = vmatpush1.msra.mxu0 0.0
        %480 = vmatprep.subr.mxu0 0.0
        %481 = vmatpush1.msra.mxu0 0.0
        %482 = vmatprep.subr.mxu0 0.0
        %483 = vmatpush1.msra.mxu0 0.0
        %484 = vmatprep.subr.mxu0 0.0
        %485 = vmatpush1.msra.mxu0 0.0
        %486 = vmatprep.subr.mxu0 0.0
        %487 = vmatpush1.msra.mxu0 0.0
        %488 = vmatprep.subr.mxu0 0.0
        %489 = vmatpush1.msra.mxu0 0.0
        %490 = vmatprep.subr.mxu0 0.0
        %491 = vmatpush1.msra.mxu0 0.0
        %492 = vmatprep.subr.mxu0 0.0
        %493 = vmatpush1.msra.mxu0 0.0
        %494 = vmatprep.subr.mxu0 0.0
        %495 = vmatpush1.msra.mxu0 0.0
        %496 = vmatprep.subr.mxu0 0.0
        %497 = vmatpush1.msra.mxu0 %v460
        %498 = vmatprep.subr.mxu0 0.0
        %499 = vmatpush1.msra.mxu0 %v459
        %500 = vmatprep.subr.mxu0 0.0
        %501 = vmatpush1.msra.mxu0 %v458
        %502 = vmatprep.subr.mxu0 0.0
        %503 = vmatpush1.msra.mxu0 %v457
        %504 = vmatprep.subr.mxu0 0.0
        %505 = vmatpush2.msra.mxu0 0.0
        %506 = vmatprep.subr.mxu0 0.0
        %507 = vmatpush2.msra.mxu0 0.0
        %508 = vmatprep.subr.mxu0 0.0
        %509 = vmatpush2.msra.mxu0 0.0
        %510 = vmatprep.subr.mxu0 0.0
        %511 = vmatpush2.msra.mxu0 0.0
        %512 = vmatprep.subr.mxu0 0.0
        %513 = vmatpush2.msra.mxu0 0.0
        %514 = vmatprep.subr.mxu0 0.0
        %515 = vmatpush2.msra.mxu0 0.0
        %516 = vmatprep.subr.mxu0 0.0
        %517 = vmatpush2.msra.mxu0 0.0
        %518 = vmatprep.subr.mxu0 0.0
        %519 = vmatpush2.msra.mxu0 0.0
        %520 = vmatprep.subr.mxu0 0.0
        %521 = vmatpush2.msra.mxu0 0.0
        %522 = vmatprep.subr.mxu0 0.0
        %523 = vmatpush2.msra.mxu0 0.0
        %524 = vmatprep.subr.mxu0 0.0
        %525 = vmatpush2.msra.mxu0 0.0
        %526 = vmatprep.subr.mxu0 0.0
        %527 = vmatpush2.msra.mxu0 0.0
        %528 = vmatprep.subr.mxu0 0.0
        %529 = vmatpush2.msra.mxu0 0.0
        %530 = vmatprep.subr.mxu0 0.0
        %531 = vmatpush2.msra.mxu0 0.0
        %532 = vmatprep.subr.mxu0 0.0
        %533 = vmatpush2.msra.mxu0 0.0
        %534 = vmatprep.subr.mxu0 0.0
        %535 = vmatpush2.msra.mxu0 0.0
        %536 = vmatprep.mubr.f32.mxu0 0.0
        %537 = vmatmul.mubr.f32.gmra.mxu0 %v470
        %v538 = vpop.f32.mrf.mxu0
        %v539 = vadd.f32 %v466, %v538
        %v540 = vpop.f32.mrf.mxu0
        %541 = vdwg.mxu0
        %543 = vrot.lane.b32.xlu0 %v539, 120
        %v544 = vpop.permute.xlu0 %543
        %546 = vrot.lane.b32.xlu0 %v539, 112
        %v547 = vpop.permute.xlu0 %546
        %549 = vrot.lane.b32.xlu0 %v539, 104
        %v550 = vpop.permute.xlu0 %549
        %v552 = vmul.f32 %v539, 0.35355338
        %v553 = vmul.f32 %v544, 0.35355338
        %v554 = vmul.f32 %v547, 0.35355338
        %v555 = vmul.f32 %v550, 0.35355338
        %556 = vrot.lane.b32.xlu0 %v539, 96
        %v557 = vpop.permute.xlu0 %556
        %vm558 = vcmask 64512
        %v560 = vsel %vm558, %v552, 0
        %v562 = vsel %vm558, %v557, 0
        %564 = vmatprep.subr.mxu0 0.0
        %565 = vmatpush1.xpose.msra.mxu0 0.0
        %566 = vmatprep.subr.mxu0 0.0
        %567 = vmatpush1.xpose.msra.mxu0 0.0
        %568 = vmatprep.subr.mxu0 0.0
        %569 = vmatpush1.xpose.msra.mxu0 0.0
        %570 = vmatprep.subr.mxu0 0.0
        %571 = vmatpush1.xpose.msra.mxu0 0.0
        %572 = vmatprep.subr.mxu0 0.0
        %573 = vmatpush1.xpose.msra.mxu0 0.0
        %574 = vmatprep.subr.mxu0 0.0
        %575 = vmatpush1.xpose.msra.mxu0 0.0
        %576 = vmatprep.subr.mxu0 0.0
        %577 = vmatpush1.xpose.msra.mxu0 0.0
        %578 = vmatprep.subr.mxu0 0.0
        %579 = vmatpush1.xpose.msra.mxu0 0.0
        %580 = vmatprep.subr.mxu0 0.0
        %581 = vmatpush1.xpose.msra.mxu0 0.0
        %582 = vmatprep.subr.mxu0 0.0
        %583 = vmatpush1.xpose.msra.mxu0 0.0
        %584 = vmatprep.subr.mxu0 0.0
        %585 = vmatpush1.xpose.msra.mxu0 0.0
        %586 = vmatprep.subr.mxu0 0.0
        %587 = vmatpush1.xpose.msra.mxu0 0.0
        %588 = vmatprep.subr.mxu0 0.0
        %589 = vmatpush1.xpose.msra.mxu0 0.0
        %590 = vmatprep.subr.mxu0 0.0
        %591 = vmatpush1.xpose.msra.mxu0 0.0
        %592 = vmatprep.subr.mxu0 0.0
        %593 = vmatpush1.xpose.msra.mxu0 0.0
        %594 = vmatprep.subr.mxu0 0.0
        %595 = vmatpush1.xpose.msra.mxu0 %v562
        %596 = vmatprep.subr.mxu0 0.0
        %597 = vmatpush2.xpose.msra.mxu0 0.0
        %598 = vmatprep.subr.mxu0 0.0
        %599 = vmatpush2.xpose.msra.mxu0 0.0
        %600 = vmatprep.subr.mxu0 0.0
        %601 = vmatpush2.xpose.msra.mxu0 0.0
        %602 = vmatprep.subr.mxu0 0.0
        %603 = vmatpush2.xpose.msra.mxu0 0.0
        %604 = vmatprep.subr.mxu0 0.0
        %605 = vmatpush2.xpose.msra.mxu0 0.0
        %606 = vmatprep.subr.mxu0 0.0
        %607 = vmatpush2.xpose.msra.mxu0 0.0
        %608 = vmatprep.subr.mxu0 0.0
        %609 = vmatpush2.xpose.msra.mxu0 0.0
        %610 = vmatprep.subr.mxu0 0.0
        %611 = vmatpush2.xpose.msra.mxu0 0.0
        %612 = vmatprep.subr.mxu0 0.0
        %613 = vmatpush2.xpose.msra.mxu0 0.0
        %614 = vmatprep.subr.mxu0 0.0
        %615 = vmatpush2.xpose.msra.mxu0 0.0
        %616 = vmatprep.subr.mxu0 0.0
        %617 = vmatpush2.xpose.msra.mxu0 0.0
        %618 = vmatprep.subr.mxu0 0.0
        %619 = vmatpush2.xpose.msra.mxu0 0.0
        %620 = vmatprep.subr.mxu0 0.0
        %621 = vmatpush2.xpose.msra.mxu0 0.0
        %622 = vmatprep.subr.mxu0 0.0
        %623 = vmatpush2.xpose.msra.mxu0 0.0
        %624 = vmatprep.subr.mxu0 0.0
        %625 = vmatpush2.xpose.msra.mxu0 0.0
        %626 = vmatprep.subr.mxu0 0.0
        %627 = vmatpush2.xpose.msra.mxu0 0.0
        %628 = vmatprep.mubr.f32.mxu0 0.0
        %629 = vmatmul.mubr.f32.gmra.mxu0 %v560
        %v630 = vpop.f32.mrf.mxu0
        %v631 = vadd.f32 0.0, %v630
        %v632 = vpop.f32.mrf.mxu0
        %633 = vdwg.mxu0
        %634 = vrot.lane.b32.xlu0 %v544, 96
        %v635 = vpop.permute.xlu0 %634
        %v637 = vsel %vm558, %v553, 0
        %v639 = vsel %vm558, %v635, 0
        %641 = vmatprep.subr.mxu0 0.0
        %642 = vmatpush1.xpose.msra.mxu0 0.0
        %643 = vmatprep.subr.mxu0 0.0
        %644 = vmatpush1.xpose.msra.mxu0 0.0
        %645 = vmatprep.subr.mxu0 0.0
        %646 = vmatpush1.xpose.msra.mxu0 0.0
        %647 = vmatprep.subr.mxu0 0.0
        %648 = vmatpush1.xpose.msra.mxu0 0.0
        %649 = vmatprep.subr.mxu0 0.0
        %650 = vmatpush1.xpose.msra.mxu0 0.0
        %651 = vmatprep.subr.mxu0 0.0
        %652 = vmatpush1.xpose.msra.mxu0 0.0
        %653 = vmatprep.subr.mxu0 0.0
        %654 = vmatpush1.xpose.msra.mxu0 0.0
        %655 = vmatprep.subr.mxu0 0.0
        %656 = vmatpush1.xpose.msra.mxu0 0.0
        %657 = vmatprep.subr.mxu0 0.0
        %658 = vmatpush1.xpose.msra.mxu0 0.0
        %659 = vmatprep.subr.mxu0 0.0
        %660 = vmatpush1.xpose.msra.mxu0 0.0
        %661 = vmatprep.subr.mxu0 0.0
        %662 = vmatpush1.xpose.msra.mxu0 0.0
        %663 = vmatprep.subr.mxu0 0.0
        %664 = vmatpush1.xpose.msra.mxu0 0.0
        %665 = vmatprep.subr.mxu0 0.0
        %666 = vmatpush1.xpose.msra.mxu0 0.0
        %667 = vmatprep.subr.mxu0 0.0
        %668 = vmatpush1.xpose.msra.mxu0 0.0
        %669 = vmatprep.subr.mxu0 0.0
        %670 = vmatpush1.xpose.msra.mxu0 0.0
        %671 = vmatprep.subr.mxu0 0.0
        %672 = vmatpush1.xpose.msra.mxu0 %v639
        %673 = vmatprep.subr.mxu0 0.0
        %674 = vmatpush2.xpose.msra.mxu0 0.0
        %675 = vmatprep.subr.mxu0 0.0
        %676 = vmatpush2.xpose.msra.mxu0 0.0
        %677 = vmatprep.subr.mxu0 0.0
        %678 = vmatpush2.xpose.msra.mxu0 0.0
        %679 = vmatprep.subr.mxu0 0.0
        %680 = vmatpush2.xpose.msra.mxu0 0.0
        %681 = vmatprep.subr.mxu0 0.0
        %682 = vmatpush2.xpose.msra.mxu0 0.0
        %683 = vmatprep.subr.mxu0 0.0
        %684 = vmatpush2.xpose.msra.mxu0 0.0
        %685 = vmatprep.subr.mxu0 0.0
        %686 = vmatpush2.xpose.msra.mxu0 0.0
        %687 = vmatprep.subr.mxu0 0.0
        %688 = vmatpush2.xpose.msra.mxu0 0.0
        %689 = vmatprep.subr.mxu0 0.0
        %690 = vmatpush2.xpose.msra.mxu0 0.0
        %691 = vmatprep.subr.mxu0 0.0
        %692 = vmatpush2.xpose.msra.mxu0 0.0
        %693 = vmatprep.subr.mxu0 0.0
        %694 = vmatpush2.xpose.msra.mxu0 0.0
        %695 = vmatprep.subr.mxu0 0.0
        %696 = vmatpush2.xpose.msra.mxu0 0.0
        %697 = vmatprep.subr.mxu0 0.0
        %698 = vmatpush2.xpose.msra.mxu0 0.0
        %699 = vmatprep.subr.mxu0 0.0
        %700 = vmatpush2.xpose.msra.mxu0 0.0
        %701 = vmatprep.subr.mxu0 0.0
        %702 = vmatpush2.xpose.msra.mxu0 0.0
        %703 = vmatprep.subr.mxu0 0.0
        %704 = vmatpush2.xpose.msra.mxu0 0.0
        %705 = vmatprep.mubr.f32.mxu0 0.0
        %706 = vmatmul.mubr.f32.gmra.mxu0 %v637
        %v707 = vpop.f32.mrf.mxu0
        %v708 = vadd.f32 0.0, %v707
        %v709 = vpop.f32.mrf.mxu0
        %710 = vdwg.mxu0
        %711 = vrot.lane.b32.xlu0 %v547, 96
        %v712 = vpop.permute.xlu0 %711
        %v714 = vsel %vm558, %v554, 0
        %v716 = vsel %vm558, %v712, 0
        %718 = vmatprep.subr.mxu0 0.0
        %719 = vmatpush1.xpose.msra.mxu0 0.0
        %720 = vmatprep.subr.mxu0 0.0
        %721 = vmatpush1.xpose.msra.mxu0 0.0
        %722 = vmatprep.subr.mxu0 0.0
        %723 = vmatpush1.xpose.msra.mxu0 0.0
        %724 = vmatprep.subr.mxu0 0.0
        %725 = vmatpush1.xpose.msra.mxu0 0.0
        %726 = vmatprep.subr.mxu0 0.0
        %727 = vmatpush1.xpose.msra.mxu0 0.0
        %728 = vmatprep.subr.mxu0 0.0
        %729 = vmatpush1.xpose.msra.mxu0 0.0
        %730 = vmatprep.subr.mxu0 0.0
        %731 = vmatpush1.xpose.msra.mxu0 0.0
        %732 = vmatprep.subr.mxu0 0.0
        %733 = vmatpush1.xpose.msra.mxu0 0.0
        %734 = vmatprep.subr.mxu0 0.0
        %735 = vmatpush1.xpose.msra.mxu0 0.0
        %736 = vmatprep.subr.mxu0 0.0
        %737 = vmatpush1.xpose.msra.mxu0 0.0
        %738 = vmatprep.subr.mxu0 0.0
        %739 = vmatpush1.xpose.msra.mxu0 0.0
        %740 = vmatprep.subr.mxu0 0.0
        %741 = vmatpush1.xpose.msra.mxu0 0.0
        %742 = vmatprep.subr.mxu0 0.0
        %743 = vmatpush1.xpose.msra.mxu0 0.0
        %744 = vmatprep.subr.mxu0 0.0
        %745 = vmatpush1.xpose.msra.mxu0 0.0
        %746 = vmatprep.subr.mxu0 0.0
        %747 = vmatpush1.xpose.msra.mxu0 0.0
        %748 = vmatprep.subr.mxu0 0.0
        %749 = vmatpush1.xpose.msra.mxu0 %v716
        %750 = vmatprep.subr.mxu0 0.0
        %751 = vmatpush2.xpose.msra.mxu0 0.0
        %752 = vmatprep.subr.mxu0 0.0
        %753 = vmatpush2.xpose.msra.mxu0 0.0
        %754 = vmatprep.subr.mxu0 0.0
        %755 = vmatpush2.xpose.msra.mxu0 0.0
        %756 = vmatprep.subr.mxu0 0.0
        %757 = vmatpush2.xpose.msra.mxu0 0.0
        %758 = vmatprep.subr.mxu0 0.0
        %759 = vmatpush2.xpose.msra.mxu0 0.0
        %760 = vmatprep.subr.mxu0 0.0
        %761 = vmatpush2.xpose.msra.mxu0 0.0
        %762 = vmatprep.subr.mxu0 0.0
        %763 = vmatpush2.xpose.msra.mxu0 0.0
        %764 = vmatprep.subr.mxu0 0.0
        %765 = vmatpush2.xpose.msra.mxu0 0.0
        %766 = vmatprep.subr.mxu0 0.0
        %767 = vmatpush2.xpose.msra.mxu0 0.0
        %768 = vmatprep.subr.mxu0 0.0
        %769 = vmatpush2.xpose.msra.mxu0 0.0
        %770 = vmatprep.subr.mxu0 0.0
        %771 = vmatpush2.xpose.msra.mxu0 0.0
        %772 = vmatprep.subr.mxu0 0.0
        %773 = vmatpush2.xpose.msra.mxu0 0.0
        %774 = vmatprep.subr.mxu0 0.0
        %775 = vmatpush2.xpose.msra.mxu0 0.0
        %776 = vmatprep.subr.mxu0 0.0
        %777 = vmatpush2.xpose.msra.mxu0 0.0
        %778 = vmatprep.subr.mxu0 0.0
        %779 = vmatpush2.xpose.msra.mxu0 0.0
        %780 = vmatprep.subr.mxu0 0.0
        %781 = vmatpush2.xpose.msra.mxu0 0.0
        %782 = vmatprep.mubr.f32.mxu0 0.0
        %783 = vmatmul.mubr.f32.gmra.mxu0 %v714
        %v784 = vpop.f32.mrf.mxu0
        %v785 = vadd.f32 0.0, %v784
        %v786 = vpop.f32.mrf.mxu0
        %787 = vdwg.mxu0
        %788 = vrot.lane.b32.xlu0 %v550, 96
        %v789 = vpop.permute.xlu0 %788
        %v791 = vsel %vm558, %v555, 0
        %v793 = vsel %vm558, %v789, 0
        %795 = vmatprep.subr.mxu0 0.0
        %796 = vmatpush1.xpose.msra.mxu0 0.0
        %797 = vmatprep.subr.mxu0 0.0
        %798 = vmatpush1.xpose.msra.mxu0 0.0
        %799 = vmatprep.subr.mxu0 0.0
        %800 = vmatpush1.xpose.msra.mxu0 0.0
        %801 = vmatprep.subr.mxu0 0.0
        %802 = vmatpush1.xpose.msra.mxu0 0.0
        %803 = vmatprep.subr.mxu0 0.0
        %804 = vmatpush1.xpose.msra.mxu0 0.0
        %805 = vmatprep.subr.mxu0 0.0
        %806 = vmatpush1.xpose.msra.mxu0 0.0
        %807 = vmatprep.subr.mxu0 0.0
        %808 = vmatpush1.xpose.msra.mxu0 0.0
        %809 = vmatprep.subr.mxu0 0.0
        %810 = vmatpush1.xpose.msra.mxu0 0.0
        %811 = vmatprep.subr.mxu0 0.0
        %812 = vmatpush1.xpose.msra.mxu0 0.0
        %813 = vmatprep.subr.mxu0 0.0
        %814 = vmatpush1.xpose.msra.mxu0 0.0
        %815 = vmatprep.subr.mxu0 0.0
        %816 = vmatpush1.xpose.msra.mxu0 0.0
        %817 = vmatprep.subr.mxu0 0.0
        %818 = vmatpush1.xpose.msra.mxu0 0.0
        %819 = vmatprep.subr.mxu0 0.0
        %820 = vmatpush1.xpose.msra.mxu0 0.0
        %821 = vmatprep.subr.mxu0 0.0
        %822 = vmatpush1.xpose.msra.mxu0 0.0
        %823 = vmatprep.subr.mxu0 0.0
        %824 = vmatpush1.xpose.msra.mxu0 0.0
        %825 = vmatprep.subr.mxu0 0.0
        %826 = vmatpush1.xpose.msra.mxu0 %v793
        %827 = vmatprep.subr.mxu0 0.0
        %828 = vmatpush2.xpose.msra.mxu0 0.0
        %829 = vmatprep.subr.mxu0 0.0
        %830 = vmatpush2.xpose.msra.mxu0 0.0
        %831 = vmatprep.subr.mxu0 0.0
        %832 = vmatpush2.xpose.msra.mxu0 0.0
        %833 = vmatprep.subr.mxu0 0.0
        %834 = vmatpush2.xpose.msra.mxu0 0.0
        %835 = vmatprep.subr.mxu0 0.0
        %836 = vmatpush2.xpose.msra.mxu0 0.0
        %837 = vmatprep.subr.mxu0 0.0
        %838 = vmatpush2.xpose.msra.mxu0 0.0
        %839 = vmatprep.subr.mxu0 0.0
        %840 = vmatpush2.xpose.msra.mxu0 0.0
        %841 = vmatprep.subr.mxu0 0.0
        %842 = vmatpush2.xpose.msra.mxu0 0.0
        %843 = vmatprep.subr.mxu0 0.0
        %844 = vmatpush2.xpose.msra.mxu0 0.0
        %845 = vmatprep.subr.mxu0 0.0
        %846 = vmatpush2.xpose.msra.mxu0 0.0
        %847 = vmatprep.subr.mxu0 0.0
        %848 = vmatpush2.xpose.msra.mxu0 0.0
        %849 = vmatprep.subr.mxu0 0.0
        %850 = vmatpush2.xpose.msra.mxu0 0.0
        %851 = vmatprep.subr.mxu0 0.0
        %852 = vmatpush2.xpose.msra.mxu0 0.0
        %853 = vmatprep.subr.mxu0 0.0
        %854 = vmatpush2.xpose.msra.mxu0 0.0
        %855 = vmatprep.subr.mxu0 0.0
        %856 = vmatpush2.xpose.msra.mxu0 0.0
        %857 = vmatprep.subr.mxu0 0.0
        %858 = vmatpush2.xpose.msra.mxu0 0.0
        %859 = vmatprep.mubr.f32.mxu0 0.0
        %860 = vmatmul.mubr.f32.gmra.mxu0 %v791
        %v861 = vpop.f32.mrf.mxu0
        %v862 = vadd.f32 0.0, %v861
        %v863 = vpop.f32.mrf.mxu0
        %864 = vdwg.mxu0
        %v865 = vsel %vm558, %v631, -inf
        %866 = vmax.xlane.f32.xlu0 %v865
        %v867 = vpop.xlane.xlu0 %866
        %v868 = vsel %vm558, %v708, -inf
        %869 = vmax.xlane.f32.xlu0 %v868
        %v870 = vpop.xlane.xlu0 %869
        %v871 = vsel %vm558, %v785, -inf
        %872 = vmax.xlane.f32.xlu0 %v871
        %v873 = vpop.xlane.xlu0 %872
        %v874 = vsel %vm558, %v862, -inf
        %875 = vmax.xlane.f32.xlu0 %v874
        %v876 = vpop.xlane.xlu0 %875
        %v877 = vsub.f32 %v631, %v867
        %v878 = vsub.f32 %v708, %v870
        %v879 = vsub.f32 %v785, %v873
        %v880 = vsub.f32 %v862, %v876
        %v881 = vmul.f32 %v877, 1.442695
        %v882 = vpow.pop %v881
        %v883 = vmul.f32 %v878, 1.442695
        %v884 = vpow.pop %v883
        %v885 = vmul.f32 %v879, 1.442695
        %v886 = vpow.pop %v885
        %v887 = vmul.f32 %v880, 1.442695
        %v888 = vpow.pop %v887
        %v889 = vsel %vm558, %v882, 0.0
        %890 = vadd.xlane.f32.xlu0 %v889
        %v891 = vpop.xlane.xlu0 %890
        %v892 = vsel %vm558, %v884, 0.0
        %893 = vadd.xlane.f32.xlu0 %v892
        %v894 = vpop.xlane.xlu0 %893
        %v895 = vsel %vm558, %v886, 0.0
        %896 = vadd.xlane.f32.xlu0 %v895
        %v897 = vpop.xlane.xlu0 %896
        %v898 = vsel %vm558, %v888, 0.0
        %899 = vadd.xlane.f32.xlu0 %v898
        %v900 = vpop.xlane.xlu0 %899
        %v901 = vrcp.pop %v891
        %v902 = vrcp.pop %v894
        %v903 = vrcp.pop %v897
        %v904 = vrcp.pop %v900
        %v905 = vmul.f32 %v882, %v901
        %v906 = vmul.f32 %v884, %v902
        %v907 = vmul.f32 %v886, %v903
        %v908 = vmul.f32 %v888, %v904
        %909 = vrot.lane.b32.xlu0 %v539, 64
        %v910 = vpop.permute.xlu0 %909
        %v913 = vsel %vm558, %v905, 0
        %915 = vmatprep.subr.mxu0 0.0
        %916 = vmatpush1.msra.mxu0 0.0
        %917 = vmatprep.subr.mxu0 0.0
        %918 = vmatpush1.msra.mxu0 0.0
        %919 = vmatprep.subr.mxu0 0.0
        %920 = vmatpush1.msra.mxu0 0.0
        %921 = vmatprep.subr.mxu0 0.0
        %922 = vmatpush1.msra.mxu0 0.0
        %923 = vmatprep.subr.mxu0 0.0
        %924 = vmatpush1.msra.mxu0 0.0
        %925 = vmatprep.subr.mxu0 0.0
        %926 = vmatpush1.msra.mxu0 0.0
        %927 = vmatprep.subr.mxu0 0.0
        %928 = vmatpush1.msra.mxu0 0.0
        %929 = vmatprep.subr.mxu0 0.0
        %930 = vmatpush1.msra.mxu0 0.0
        %931 = vmatprep.subr.mxu0 0.0
        %932 = vmatpush1.msra.mxu0 0.0
        %933 = vmatprep.subr.mxu0 0.0
        %934 = vmatpush1.msra.mxu0 0.0
        %935 = vmatprep.subr.mxu0 0.0
        %936 = vmatpush1.msra.mxu0 0.0
        %937 = vmatprep.subr.mxu0 0.0
        %938 = vmatpush1.msra.mxu0 0.0
        %939 = vmatprep.subr.mxu0 0.0
        %940 = vmatpush1.msra.mxu0 0.0
        %941 = vmatprep.subr.mxu0 0.0
        %942 = vmatpush1.msra.mxu0 0.0
        %943 = vmatprep.subr.mxu0 0.0
        %944 = vmatpush1.msra.mxu0 0.0
        %945 = vmatprep.subr.mxu0 0.0
        %946 = vmatpush1.msra.mxu0 %v910
        %947 = vmatprep.subr.mxu0 0.0
        %948 = vmatpush2.msra.mxu0 0.0
        %949 = vmatprep.subr.mxu0 0.0
        %950 = vmatpush2.msra.mxu0 0.0
        %951 = vmatprep.subr.mxu0 0.0
        %952 = vmatpush2.msra.mxu0 0.0
        %953 = vmatprep.subr.mxu0 0.0
        %954 = vmatpush2.msra.mxu0 0.0
        %955 = vmatprep.subr.mxu0 0.0
        %956 = vmatpush2.msra.mxu0 0.0
        %957 = vmatprep.subr.mxu0 0.0
        %958 = vmatpush2.msra.mxu0 0.0
        %959 = vmatprep.subr.mxu0 0.0
        %960 = vmatpush2.msra.mxu0 0.0
        %961 = vmatprep.subr.mxu0 0.0
        %962 = vmatpush2.msra.mxu0 0.0
        %963 = vmatprep.subr.mxu0 0.0
        %964 = vmatpush2.msra.mxu0 0.0
        %965 = vmatprep.subr.mxu0 0.0
        %966 = vmatpush2.msra.mxu0 0.0
        %967 = vmatprep.subr.mxu0 0.0
        %968 = vmatpush2.msra.mxu0 0.0
        %969 = vmatprep.subr.mxu0 0.0
        %970 = vmatpush2.msra.mxu0 0.0
        %971 = vmatprep.subr.mxu0 0.0
        %972 = vmatpush2.msra.mxu0 0.0
        %973 = vmatprep.subr.mxu0 0.0
        %974 = vmatpush2.msra.mxu0 0.0
        %975 = vmatprep.subr.mxu0 0.0
        %976 = vmatpush2.msra.mxu0 0.0
        %977 = vmatprep.subr.mxu0 0.0
        %978 = vmatpush2.msra.mxu0 0.0
        %979 = vmatprep.mubr.f32.mxu0 0.0
        %980 = vmatmul.mubr.f32.gmra.mxu0 %v913
        %v981 = vpop.f32.mrf.mxu0
        %v982 = vadd.f32 0.0, %v981
        %v983 = vpop.f32.mrf.mxu0
        %984 = vdwg.mxu0
        %985 = vrot.lane.b32.xlu0 %v544, 64
        %v986 = vpop.permute.xlu0 %985
        %v989 = vsel %vm558, %v906, 0
        %991 = vmatprep.subr.mxu0 0.0
        %992 = vmatpush1.msra.mxu0 0.0
        %993 = vmatprep.subr.mxu0 0.0
        %994 = vmatpush1.msra.mxu0 0.0
        %995 = vmatprep.subr.mxu0 0.0
        %996 = vmatpush1.msra.mxu0 0.0
        %997 = vmatprep.subr.mxu0 0.0
        %998 = vmatpush1.msra.mxu0 0.0
        %999 = vmatprep.subr.mxu0 0.0
        %1000 = vmatpush1.msra.mxu0 0.0
        %1001 = vmatprep.subr.mxu0 0.0
        %1002 = vmatpush1.msra.mxu0 0.0
        %1003 = vmatprep.subr.mxu0 0.0
        %1004 = vmatpush1.msra.mxu0 0.0
        %1005 = vmatprep.subr.mxu0 0.0
        %1006 = vmatpush1.msra.mxu0 0.0
        %1007 = vmatprep.subr.mxu0 0.0
        %1008 = vmatpush1.msra.mxu0 0.0
        %1009 = vmatprep.subr.mxu0 0.0
        %1010 = vmatpush1.msra.mxu0 0.0
        %1011 = vmatprep.subr.mxu0 0.0
        %1012 = vmatpush1.msra.mxu0 0.0
        %1013 = vmatprep.subr.mxu0 0.0
        %1014 = vmatpush1.msra.mxu0 0.0
        %1015 = vmatprep.subr.mxu0 0.0
        %1016 = vmatpush1.msra.mxu0 0.0
        %1017 = vmatprep.subr.mxu0 0.0
        %1018 = vmatpush1.msra.mxu0 0.0
        %1019 = vmatprep.subr.mxu0 0.0
        %1020 = vmatpush1.msra.mxu0 0.0
        %1021 = vmatprep.subr.mxu0 0.0
        %1022 = vmatpush1.msra.mxu0 %v986
        %1023 = vmatprep.subr.mxu0 0.0
        %1024 = vmatpush2.msra.mxu0 0.0
        %1025 = vmatprep.subr.mxu0 0.0
        %1026 = vmatpush2.msra.mxu0 0.0
        %1027 = vmatprep.subr.mxu0 0.0
        %1028 = vmatpush2.msra.mxu0 0.0
        %1029 = vmatprep.subr.mxu0 0.0
        %1030 = vmatpush2.msra.mxu0 0.0
        %1031 = vmatprep.subr.mxu0 0.0
        %1032 = vmatpush2.msra.mxu0 0.0
        %1033 = vmatprep.subr.mxu0 0.0
        %1034 = vmatpush2.msra.mxu0 0.0
        %1035 = vmatprep.subr.mxu0 0.0
        %1036 = vmatpush2.msra.mxu0 0.0
        %1037 = vmatprep.subr.mxu0 0.0
        %1038 = vmatpush2.msra.mxu0 0.0
        %1039 = vmatprep.subr.mxu0 0.0
        %1040 = vmatpush2.msra.mxu0 0.0
        %1041 = vmatprep.subr.mxu0 0.0
        %1042 = vmatpush2.msra.mxu0 0.0
        %1043 = vmatprep.subr.mxu0 0.0
        %1044 = vmatpush2.msra.mxu0 0.0
        %1045 = vmatprep.subr.mxu0 0.0
        %1046 = vmatpush2.msra.mxu0 0.0
        %1047 = vmatprep.subr.mxu0 0.0
        %1048 = vmatpush2.msra.mxu0 0.0
        %1049 = vmatprep.subr.mxu0 0.0
        %1050 = vmatpush2.msra.mxu0 0.0
        %1051 = vmatprep.subr.mxu0 0.0
        %1052 = vmatpush2.msra.mxu0 0.0
        %1053 = vmatprep.subr.mxu0 0.0
        %1054 = vmatpush2.msra.mxu0 0.0
        %1055 = vmatprep.mubr.f32.mxu0 0.0
        %1056 = vmatmul.mubr.f32.gmra.mxu0 %v989
        %v1057 = vpop.f32.mrf.mxu0
        %v1058 = vadd.f32 0.0, %v1057
        %v1059 = vpop.f32.mrf.mxu0
        %1060 = vdwg.mxu0
        %1061 = vrot.lane.b32.xlu0 %v547, 64
        %v1062 = vpop.permute.xlu0 %1061
        %v1065 = vsel %vm558, %v907, 0
        %1067 = vmatprep.subr.mxu0 0.0
        %1068 = vmatpush1.msra.mxu0 0.0
        %1069 = vmatprep.subr.mxu0 0.0
        %1070 = vmatpush1.msra.mxu0 0.0
        %1071 = vmatprep.subr.mxu0 0.0
        %1072 = vmatpush1.msra.mxu0 0.0
        %1073 = vmatprep.subr.mxu0 0.0
        %1074 = vmatpush1.msra.mxu0 0.0
        %1075 = vmatprep.subr.mxu0 0.0
        %1076 = vmatpush1.msra.mxu0 0.0
        %1077 = vmatprep.subr.mxu0 0.0
        %1078 = vmatpush1.msra.mxu0 0.0
        %1079 = vmatprep.subr.mxu0 0.0
        %1080 = vmatpush1.msra.mxu0 0.0
        %1081 = vmatprep.subr.mxu0 0.0
        %1082 = vmatpush1.msra.mxu0 0.0
        %1083 = vmatprep.subr.mxu0 0.0
        %1084 = vmatpush1.msra.mxu0 0.0
        %1085 = vmatprep.subr.mxu0 0.0
        %1086 = vmatpush1.msra.mxu0 0.0
        %1087 = vmatprep.subr.mxu0 0.0
        %1088 = vmatpush1.msra.mxu0 0.0
        %1089 = vmatprep.subr.mxu0 0.0
        %1090 = vmatpush1.msra.mxu0 0.0
        %1091 = vmatprep.subr.mxu0 0.0
        %1092 = vmatpush1.msra.mxu0 0.0
        %1093 = vmatprep.subr.mxu0 0.0
        %1094 = vmatpush1.msra.mxu0 0.0
        %1095 = vmatprep.subr.mxu0 0.0
        %1096 = vmatpush1.msra.mxu0 0.0
        %1097 = vmatprep.subr.mxu0 0.0
        %1098 = vmatpush1.msra.mxu0 %v1062
        %1099 = vmatprep.subr.mxu0 0.0
        %1100 = vmatpush2.msra.mxu0 0.0
        %1101 = vmatprep.subr.mxu0 0.0
        %1102 = vmatpush2.msra.mxu0 0.0
        %1103 = vmatprep.subr.mxu0 0.0
        %1104 = vmatpush2.msra.mxu0 0.0
        %1105 = vmatprep.subr.mxu0 0.0
        %1106 = vmatpush2.msra.mxu0 0.0
        %1107 = vmatprep.subr.mxu0 0.0
        %1108 = vmatpush2.msra.mxu0 0.0
        %1109 = vmatprep.subr.mxu0 0.0
        %1110 = vmatpush2.msra.mxu0 0.0
        %1111 = vmatprep.subr.mxu0 0.0
        %1112 = vmatpush2.msra.mxu0 0.0
        %1113 = vmatprep.subr.mxu0 0.0
        %1114 = vmatpush2.msra.mxu0 0.0
        %1115 = vmatprep.subr.mxu0 0.0
        %1116 = vmatpush2.msra.mxu0 0.0
        %1117 = vmatprep.subr.mxu0 0.0
        %1118 = vmatpush2.msra.mxu0 0.0
        %1119 = vmatprep.subr.mxu0 0.0
        %1120 = vmatpush2.msra.mxu0 0.0
        %1121 = vmatprep.subr.mxu0 0.0
        %1122 = vmatpush2.msra.mxu0 0.0
        %1123 = vmatprep.subr.mxu0 0.0
        %1124 = vmatpush2.msra.mxu0 0.0
        %1125 = vmatprep.subr.mxu0 0.0
        %1126 = vmatpush2.msra.mxu0 0.0
        %1127 = vmatprep.subr.mxu0 0.0
        %1128 = vmatpush2.msra.mxu0 0.0
        %1129 = vmatprep.subr.mxu0 0.0
        %1130 = vmatpush2.msra.mxu0 0.0
        %1131 = vmatprep.mubr.f32.mxu0 0.0
        %1132 = vmatmul.mubr.f32.gmra.mxu0 %v1065
        %v1133 = vpop.f32.mrf.mxu0
        %v1134 = vadd.f32 0.0, %v1133
        %v1135 = vpop.f32.mrf.mxu0
        %1136 = vdwg.mxu0
        %1137 = vrot.lane.b32.xlu0 %v550, 64
        %v1138 = vpop.permute.xlu0 %1137
        %v1141 = vsel %vm558, %v908, 0
        %1143 = vmatprep.subr.mxu0 0.0
        %1144 = vmatpush1.msra.mxu0 0.0
        %1145 = vmatprep.subr.mxu0 0.0
        %1146 = vmatpush1.msra.mxu0 0.0
        %1147 = vmatprep.subr.mxu0 0.0
        %1148 = vmatpush1.msra.mxu0 0.0
        %1149 = vmatprep.subr.mxu0 0.0
        %1150 = vmatpush1.msra.mxu0 0.0
        %1151 = vmatprep.subr.mxu0 0.0
        %1152 = vmatpush1.msra.mxu0 0.0
        %1153 = vmatprep.subr.mxu0 0.0
        %1154 = vmatpush1.msra.mxu0 0.0
        %1155 = vmatprep.subr.mxu0 0.0
        %1156 = vmatpush1.msra.mxu0 0.0
        %1157 = vmatprep.subr.mxu0 0.0
        %1158 = vmatpush1.msra.mxu0 0.0
        %1159 = vmatprep.subr.mxu0 0.0
        %1160 = vmatpush1.msra.mxu0 0.0
        %1161 = vmatprep.subr.mxu0 0.0
        %1162 = vmatpush1.msra.mxu0 0.0
        %1163 = vmatprep.subr.mxu0 0.0
        %1164 = vmatpush1.msra.mxu0 0.0
        %1165 = vmatprep.subr.mxu0 0.0
        %1166 = vmatpush1.msra.mxu0 0.0
        %1167 = vmatprep.subr.mxu0 0.0
        %1168 = vmatpush1.msra.mxu0 0.0
        %1169 = vmatprep.subr.mxu0 0.0
        %1170 = vmatpush1.msra.mxu0 0.0
        %1171 = vmatprep.subr.mxu0 0.0
        %1172 = vmatpush1.msra.mxu0 0.0
        %1173 = vmatprep.subr.mxu0 0.0
        %1174 = vmatpush1.msra.mxu0 %v1138
        %1175 = vmatprep.subr.mxu0 0.0
        %1176 = vmatpush2.msra.mxu0 0.0
        %1177 = vmatprep.subr.mxu0 0.0
        %1178 = vmatpush2.msra.mxu0 0.0
        %1179 = vmatprep.subr.mxu0 0.0
        %1180 = vmatpush2.msra.mxu0 0.0
        %1181 = vmatprep.subr.mxu0 0.0
        %1182 = vmatpush2.msra.mxu0 0.0
        %1183 = vmatprep.subr.mxu0 0.0
        %1184 = vmatpush2.msra.mxu0 0.0
        %1185 = vmatprep.subr.mxu0 0.0
        %1186 = vmatpush2.msra.mxu0 0.0
        %1187 = vmatprep.subr.mxu0 0.0
        %1188 = vmatpush2.msra.mxu0 0.0
        %1189 = vmatprep.subr.mxu0 0.0
        %1190 = vmatpush2.msra.mxu0 0.0
        %1191 = vmatprep.subr.mxu0 0.0
        %1192 = vmatpush2.msra.mxu0 0.0
        %1193 = vmatprep.subr.mxu0 0.0
        %1194 = vmatpush2.msra.mxu0 0.0
        %1195 = vmatprep.subr.mxu0 0.0
        %1196 = vmatpush2.msra.mxu0 0.0
        %1197 = vmatprep.subr.mxu0 0.0
        %1198 = vmatpush2.msra.mxu0 0.0
        %1199 = vmatprep.subr.mxu0 0.0
        %1200 = vmatpush2.msra.mxu0 0.0
        %1201 = vmatprep.subr.mxu0 0.0
        %1202 = vmatpush2.msra.mxu0 0.0
        %1203 = vmatprep.subr.mxu0 0.0
        %1204 = vmatpush2.msra.mxu0 0.0
        %1205 = vmatprep.subr.mxu0 0.0
        %1206 = vmatpush2.msra.mxu0 0.0
        %1207 = vmatprep.mubr.f32.mxu0 0.0
        %1208 = vmatmul.mubr.f32.gmra.mxu0 %v1141
        %v1209 = vpop.f32.mrf.mxu0
        %v1210 = vadd.f32 0.0, %v1209
        %v1211 = vpop.f32.mrf.mxu0
        %1212 = vdwg.mxu0
        %v1213 = vld [vmem:[%s3] sm:$0xff]
        %v1214 = vld [vmem:[%s3 + $0x8] sm:$0xff]
        %v1215 = vld [vmem:[%s3 + $0x10] sm:$0xff]
        %v1216 = vld [vmem:[%s3 + $0x18] sm:$0xff]
        %v1218 = vsel %vm558, %v982, 0
        %1220 = vmatprep.subr.mxu0 0.0
        %1221 = vmatpush1.msra.mxu0 0.0
        %1222 = vmatprep.subr.mxu0 0.0
        %1223 = vmatpush1.msra.mxu0 0.0
        %1224 = vmatprep.subr.mxu0 0.0
        %1225 = vmatpush1.msra.mxu0 0.0
        %1226 = vmatprep.subr.mxu0 0.0
        %1227 = vmatpush1.msra.mxu0 0.0
        %1228 = vmatprep.subr.mxu0 0.0
        %1229 = vmatpush1.msra.mxu0 0.0
        %1230 = vmatprep.subr.mxu0 0.0
        %1231 = vmatpush1.msra.mxu0 0.0
        %1232 = vmatprep.subr.mxu0 0.0
        %1233 = vmatpush1.msra.mxu0 0.0
        %1234 = vmatprep.subr.mxu0 0.0
        %1235 = vmatpush1.msra.mxu0 0.0
        %1236 = vmatprep.subr.mxu0 0.0
        %1237 = vmatpush1.msra.mxu0 0.0
        %1238 = vmatprep.subr.mxu0 0.0
        %1239 = vmatpush1.msra.mxu0 0.0
        %1240 = vmatprep.subr.mxu0 0.0
        %1241 = vmatpush1.msra.mxu0 0.0
        %1242 = vmatprep.subr.mxu0 0.0
        %1243 = vmatpush1.msra.mxu0 0.0
        %1244 = vmatprep.subr.mxu0 0.0
        %1245 = vmatpush1.msra.mxu0 0.0
        %1246 = vmatprep.subr.mxu0 0.0
        %1247 = vmatpush1.msra.mxu0 0.0
        %1248 = vmatprep.subr.mxu0 0.0
        %1249 = vmatpush1.msra.mxu0 0.0
        %1250 = vmatprep.subr.mxu0 0.0
        %1251 = vmatpush1.msra.mxu0 %v1213
        %1252 = vmatprep.subr.mxu0 0.0
        %1253 = vmatpush2.msra.mxu0 0.0
        %1254 = vmatprep.subr.mxu0 0.0
        %1255 = vmatpush2.msra.mxu0 0.0
        %1256 = vmatprep.subr.mxu0 0.0
        %1257 = vmatpush2.msra.mxu0 0.0
        %1258 = vmatprep.subr.mxu0 0.0
        %1259 = vmatpush2.msra.mxu0 0.0
        %1260 = vmatprep.subr.mxu0 0.0
        %1261 = vmatpush2.msra.mxu0 0.0
        %1262 = vmatprep.subr.mxu0 0.0
        %1263 = vmatpush2.msra.mxu0 0.0
        %1264 = vmatprep.subr.mxu0 0.0
        %1265 = vmatpush2.msra.mxu0 0.0
        %1266 = vmatprep.subr.mxu0 0.0
        %1267 = vmatpush2.msra.mxu0 0.0
        %1268 = vmatprep.subr.mxu0 0.0
        %1269 = vmatpush2.msra.mxu0 0.0
        %1270 = vmatprep.subr.mxu0 0.0
        %1271 = vmatpush2.msra.mxu0 0.0
        %1272 = vmatprep.subr.mxu0 0.0
        %1273 = vmatpush2.msra.mxu0 0.0
        %1274 = vmatprep.subr.mxu0 0.0
        %1275 = vmatpush2.msra.mxu0 0.0
        %1276 = vmatprep.subr.mxu0 0.0
        %1277 = vmatpush2.msra.mxu0 0.0
        %1278 = vmatprep.subr.mxu0 0.0
        %1279 = vmatpush2.msra.mxu0 0.0
        %1280 = vmatprep.subr.mxu0 0.0
        %1281 = vmatpush2.msra.mxu0 0.0
        %1282 = vmatprep.subr.mxu0 0.0
        %1283 = vmatpush2.msra.mxu0 0.0
        %1284 = vmatprep.mubr.f32.mxu0 0.0
        %1285 = vmatmul.mubr.f32.gmra.mxu0 %v1218
        %v1286 = vpop.f32.mrf.mxu0
        %v1287 = vadd.f32 0.0, %v1286
        %v1288 = vpop.f32.mrf.mxu0
        %1289 = vdwg.mxu0
        %v1291 = vsel %vm558, %v1058, 0
        %1293 = vmatprep.subr.mxu0 0.0
        %1294 = vmatpush1.msra.mxu0 0.0
        %1295 = vmatprep.subr.mxu0 0.0
        %1296 = vmatpush1.msra.mxu0 0.0
        %1297 = vmatprep.subr.mxu0 0.0
        %1298 = vmatpush1.msra.mxu0 0.0
        %1299 = vmatprep.subr.mxu0 0.0
        %1300 = vmatpush1.msra.mxu0 0.0
        %1301 = vmatprep.subr.mxu0 0.0
        %1302 = vmatpush1.msra.mxu0 0.0
        %1303 = vmatprep.subr.mxu0 0.0
        %1304 = vmatpush1.msra.mxu0 0.0
        %1305 = vmatprep.subr.mxu0 0.0
        %1306 = vmatpush1.msra.mxu0 0.0
        %1307 = vmatprep.subr.mxu0 0.0
        %1308 = vmatpush1.msra.mxu0 0.0
        %1309 = vmatprep.subr.mxu0 0.0
        %1310 = vmatpush1.msra.mxu0 0.0
        %1311 = vmatprep.subr.mxu0 0.0
        %1312 = vmatpush1.msra.mxu0 0.0
        %1313 = vmatprep.subr.mxu0 0.0
        %1314 = vmatpush1.msra.mxu0 0.0
        %1315 = vmatprep.subr.mxu0 0.0
        %1316 = vmatpush1.msra.mxu0 0.0
        %1317 = vmatprep.subr.mxu0 0.0
        %1318 = vmatpush1.msra.mxu0 0.0
        %1319 = vmatprep.subr.mxu0 0.0
        %1320 = vmatpush1.msra.mxu0 0.0
        %1321 = vmatprep.subr.mxu0 0.0
        %1322 = vmatpush1.msra.mxu0 0.0
        %1323 = vmatprep.subr.mxu0 0.0
        %1324 = vmatpush1.msra.mxu0 %v1214
        %1325 = vmatprep.subr.mxu0 0.0
        %1326 = vmatpush2.msra.mxu0 0.0
        %1327 = vmatprep.subr.mxu0 0.0
        %1328 = vmatpush2.msra.mxu0 0.0
        %1329 = vmatprep.subr.mxu0 0.0
        %1330 = vmatpush2.msra.mxu0 0.0
        %1331 = vmatprep.subr.mxu0 0.0
        %1332 = vmatpush2.msra.mxu0 0.0
        %1333 = vmatprep.subr.mxu0 0.0
        %1334 = vmatpush2.msra.mxu0 0.0
        %1335 = vmatprep.subr.mxu0 0.0
        %1336 = vmatpush2.msra.mxu0 0.0
        %1337 = vmatprep.subr.mxu0 0.0
        %1338 = vmatpush2.msra.mxu0 0.0
        %1339 = vmatprep.subr.mxu0 0.0
        %1340 = vmatpush2.msra.mxu0 0.0
        %1341 = vmatprep.subr.mxu0 0.0
        %1342 = vmatpush2.msra.mxu0 0.0
        %1343 = vmatprep.subr.mxu0 0.0
        %1344 = vmatpush2.msra.mxu0 0.0
        %1345 = vmatprep.subr.mxu0 0.0
        %1346 = vmatpush2.msra.mxu0 0.0
        %1347 = vmatprep.subr.mxu0 0.0
        %1348 = vmatpush2.msra.mxu0 0.0
        %1349 = vmatprep.subr.mxu0 0.0
        %1350 = vmatpush2.msra.mxu0 0.0
        %1351 = vmatprep.subr.mxu0 0.0
        %1352 = vmatpush2.msra.mxu0 0.0
        %1353 = vmatprep.subr.mxu0 0.0
        %1354 = vmatpush2.msra.mxu0 0.0
        %1355 = vmatprep.subr.mxu0 0.0
        %1356 = vmatpush2.msra.mxu0 0.0
        %1357 = vmatprep.mubr.f32.mxu0 0.0
        %1358 = vmatmul.mubr.f32.gmra.mxu0 %v1291
        %v1359 = vpop.f32.mrf.mxu0
        %v1360 = vadd.f32 0.0, %v1359
        %v1361 = vpop.f32.mrf.mxu0
        %1362 = vdwg.mxu0
        %v1364 = vsel %vm558, %v1134, 0
        %1366 = vmatprep.subr.mxu0 0.0
        %1367 = vmatpush1.msra.mxu0 0.0
        %1368 = vmatprep.subr.mxu0 0.0
        %1369 = vmatpush1.msra.mxu0 0.0
        %1370 = vmatprep.subr.mxu0 0.0
        %1371 = vmatpush1.msra.mxu0 0.0
        %1372 = vmatprep.subr.mxu0 0.0
        %1373 = vmatpush1.msra.mxu0 0.0
        %1374 = vmatprep.subr.mxu0 0.0
        %1375 = vmatpush1.msra.mxu0 0.0
        %1376 = vmatprep.subr.mxu0 0.0
        %1377 = vmatpush1.msra.mxu0 0.0
        %1378 = vmatprep.subr.mxu0 0.0
        %1379 = vmatpush1.msra.mxu0 0.0
        %1380 = vmatprep.subr.mxu0 0.0
        %1381 = vmatpush1.msra.mxu0 0.0
        %1382 = vmatprep.subr.mxu0 0.0
        %1383 = vmatpush1.msra.mxu0 0.0
        %1384 = vmatprep.subr.mxu0 0.0
        %1385 = vmatpush1.msra.mxu0 0.0
        %1386 = vmatprep.subr.mxu0 0.0
        %1387 = vmatpush1.msra.mxu0 0.0
        %1388 = vmatprep.subr.mxu0 0.0
        %1389 = vmatpush1.msra.mxu0 0.0
        %1390 = vmatprep.subr.mxu0 0.0
        %1391 = vmatpush1.msra.mxu0 0.0
        %1392 = vmatprep.subr.mxu0 0.0
        %1393 = vmatpush1.msra.mxu0 0.0
        %1394 = vmatprep.subr.mxu0 0.0
        %1395 = vmatpush1.msra.mxu0 0.0
        %1396 = vmatprep.subr.mxu0 0.0
        %1397 = vmatpush1.msra.mxu0 %v1215
        %1398 = vmatprep.subr.mxu0 0.0
        %1399 = vmatpush2.msra.mxu0 0.0
        %1400 = vmatprep.subr.mxu0 0.0
        %1401 = vmatpush2.msra.mxu0 0.0
        %1402 = vmatprep.subr.mxu0 0.0
        %1403 = vmatpush2.msra.mxu0 0.0
        %1404 = vmatprep.subr.mxu0 0.0
        %1405 = vmatpush2.msra.mxu0 0.0
        %1406 = vmatprep.subr.mxu0 0.0
        %1407 = vmatpush2.msra.mxu0 0.0
        %1408 = vmatprep.subr.mxu0 0.0
        %1409 = vmatpush2.msra.mxu0 0.0
        %1410 = vmatprep.subr.mxu0 0.0
        %1411 = vmatpush2.msra.mxu0 0.0
        %1412 = vmatprep.subr.mxu0 0.0
        %1413 = vmatpush2.msra.mxu0 0.0
        %1414 = vmatprep.subr.mxu0 0.0
        %1415 = vmatpush2.msra.mxu0 0.0
        %1416 = vmatprep.subr.mxu0 0.0
        %1417 = vmatpush2.msra.mxu0 0.0
        %1418 = vmatprep.subr.mxu0 0.0
        %1419 = vmatpush2.msra.mxu0 0.0
        %1420 = vmatprep.subr.mxu0 0.0
        %1421 = vmatpush2.msra.mxu0 0.0
        %1422 = vmatprep.subr.mxu0 0.0
        %1423 = vmatpush2.msra.mxu0 0.0
        %1424 = vmatprep.subr.mxu0 0.0
        %1425 = vmatpush2.msra.mxu0 0.0
        %1426 = vmatprep.subr.mxu0 0.0
        %1427 = vmatpush2.msra.mxu0 0.0
        %1428 = vmatprep.subr.mxu0 0.0
        %1429 = vmatpush2.msra.mxu0 0.0
        %1430 = vmatprep.mubr.f32.mxu0 0.0
        %1431 = vmatmul.mubr.f32.gmra.mxu0 %v1364
        %v1432 = vpop.f32.mrf.mxu0
        %v1433 = vadd.f32 0.0, %v1432
        %v1434 = vpop.f32.mrf.mxu0
        %1435 = vdwg.mxu0
        %v1437 = vsel %vm558, %v1210, 0
        %1439 = vmatprep.subr.mxu0 0.0
        %1440 = vmatpush1.msra.mxu0 0.0
        %1441 = vmatprep.subr.mxu0 0.0
        %1442 = vmatpush1.msra.mxu0 0.0
        %1443 = vmatprep.subr.mxu0 0.0
        %1444 = vmatpush1.msra.mxu0 0.0
        %1445 = vmatprep.subr.mxu0 0.0
        %1446 = vmatpush1.msra.mxu0 0.0
        %1447 = vmatprep.subr.mxu0 0.0
        %1448 = vmatpush1.msra.mxu0 0.0
        %1449 = vmatprep.subr.mxu0 0.0
        %1450 = vmatpush1.msra.mxu0 0.0
        %1451 = vmatprep.subr.mxu0 0.0
        %1452 = vmatpush1.msra.mxu0 0.0
        %1453 = vmatprep.subr.mxu0 0.0
        %1454 = vmatpush1.msra.mxu0 0.0
        %1455 = vmatprep.subr.mxu0 0.0
        %1456 = vmatpush1.msra.mxu0 0.0
        %1457 = vmatprep.subr.mxu0 0.0
        %1458 = vmatpush1.msra.mxu0 0.0
        %1459 = vmatprep.subr.mxu0 0.0
        %1460 = vmatpush1.msra.mxu0 0.0
        %1461 = vmatprep.subr.mxu0 0.0
        %1462 = vmatpush1.msra.mxu0 0.0
        %1463 = vmatprep.subr.mxu0 0.0
        %1464 = vmatpush1.msra.mxu0 0.0
        %1465 = vmatprep.subr.mxu0 0.0
        %1466 = vmatpush1.msra.mxu0 0.0
        %1467 = vmatprep.subr.mxu0 0.0
        %1468 = vmatpush1.msra.mxu0 0.0
        %1469 = vmatprep.subr.mxu0 0.0
        %1470 = vmatpush1.msra.mxu0 %v1216
        %1471 = vmatprep.subr.mxu0 0.0
        %1472 = vmatpush2.msra.mxu0 0.0
        %1473 = vmatprep.subr.mxu0 0.0
        %1474 = vmatpush2.msra.mxu0 0.0
        %1475 = vmatprep.subr.mxu0 0.0
        %1476 = vmatpush2.msra.mxu0 0.0
        %1477 = vmatprep.subr.mxu0 0.0
        %1478 = vmatpush2.msra.mxu0 0.0
        %1479 = vmatprep.subr.mxu0 0.0
        %1480 = vmatpush2.msra.mxu0 0.0
        %1481 = vmatprep.subr.mxu0 0.0
        %1482 = vmatpush2.msra.mxu0 0.0
        %1483 = vmatprep.subr.mxu0 0.0
        %1484 = vmatpush2.msra.mxu0 0.0
        %1485 = vmatprep.subr.mxu0 0.0
        %1486 = vmatpush2.msra.mxu0 0.0
        %1487 = vmatprep.subr.mxu0 0.0
        %1488 = vmatpush2.msra.mxu0 0.0
        %1489 = vmatprep.subr.mxu0 0.0
        %1490 = vmatpush2.msra.mxu0 0.0
        %1491 = vmatprep.subr.mxu0 0.0
        %1492 = vmatpush2.msra.mxu0 0.0
        %1493 = vmatprep.subr.mxu0 0.0
        %1494 = vmatpush2.msra.mxu0 0.0
        %1495 = vmatprep.subr.mxu0 0.0
        %1496 = vmatpush2.msra.mxu0 0.0
        %1497 = vmatprep.subr.mxu0 0.0
        %1498 = vmatpush2.msra.mxu0 0.0
        %1499 = vmatprep.subr.mxu0 0.0
        %1500 = vmatpush2.msra.mxu0 0.0
        %1501 = vmatprep.subr.mxu0 0.0
        %1502 = vmatpush2.msra.mxu0 0.0
        %1503 = vmatprep.mubr.f32.mxu0 0.0
        %1504 = vmatmul.mubr.f32.gmra.mxu0 %v1437
        %v1505 = vpop.f32.mrf.mxu0
        %v1506 = vadd.f32 0.0, %v1505
        %v1507 = vpop.f32.mrf.mxu0
        %1508 = vdwg.mxu0
        %v1509 = vsel %vm468, %v1287, 0.0
        %v1510 = vsel %vm468, %v1360, 0.0
        %v1511 = vadd.f32 %v1509, %v1510
        %v1512 = vsel %vm468, %v1433, 0.0
        %v1513 = vadd.f32 %v1511, %v1512
        %v1514 = vsel %vm468, %v1506, 0.0
        %v1515 = vadd.f32 %v1513, %v1514
        %v1516 = vld [vmem:[%s4] sm:$0x1]
        %v1518 = vlaneseq
        %v1519 = vshrl.u32 %v1518, 7
        %v1520 = vsub.s32 0, %v1519
        %v1521 = vrot.slane %v1516, %v1520
        %v1523 = vadd.f32 %v1515, %v1521
        %v1524 = vadd.f32 %v456, %v1523
        %v1525 = vsel %vm468, %v1524, 0.0
        %1526 = vadd.xlane.f32.xlu0 %v1525
        %v1527 = vpop.xlane.xlu0 %1526
        %v1528 = vrcp.pop 32.0
        %v1529 = vmul.f32 %v1527, %v1528
        %v1530 = vsub.f32 %v1524, %v1529
        %v1531 = vmul.f32 %v1530, %v1530
        %v1532 = vsel %vm468, %v1531, 0.0
        %1533 = vadd.xlane.f32.xlu0 %v1532
        %v1534 = vpop.xlane.xlu0 %1533
        %v1535 = vmul.f32 %v1534, %v1528
        %v1536 = vadd.f32 %v1535, 1e-05
        %v1537 = vrsqrt.pop %v1536
        %v1538 = vmul.f32 %v1530, %v1537
        %v1539 = vld [vmem:[%s5] sm:$0x1]
        %v1541 = vlaneseq
        %v1542 = vshrl.u32 %v1541, 7
        %v1543 = vsub.s32 0, %v1542
        %v1544 = vrot.slane %v1539, %v1543
        %v1546 = vmul.f32 %v1538, %v1544
        %v1547 = vld [vmem:[%s6] sm:$0x1]
        %v1549 = vlaneseq
        %v1550 = vshrl.u32 %v1549, 7
        %v1551 = vsub.s32 0, %v1550
        %v1552 = vrot.slane %v1547, %v1551
        %v1554 = vadd.f32 %v1546, %v1552
        %v1555 = vld [vmem:[%s7] sm:$0xff]
        %v1556 = vld [vmem:[%s7 + $0x8] sm:$0xff]
        %v1557 = vld [vmem:[%s7 + $0x10] sm:$0xff]
        %v1558 = vld [vmem:[%s7 + $0x18] sm:$0xff]
        %v1559 = vld [vmem:[%s8] sm:$0x1]
        %v1561 = vlaneseq
        %v1562 = vshrl.u32 %v1561, 7
        %v1563 = vsub.s32 0, %v1562
        %v1564 = vrot.slane %v1559, %v1563
        %v1567 = vsel %vm468, %v1554, 0
        %1569 = vmatprep.subr.mxu0 0.0
        %1570 = vmatpush1.msra.mxu0 0.0
        %1571 = vmatprep.subr.mxu0 0.0
        %1572 = vmatpush1.msra.mxu0 0.0
        %1573 = vmatprep.subr.mxu0 0.0
        %1574 = vmatpush1.msra.mxu0 0.0
        %1575 = vmatprep.subr.mxu0 0.0
        %1576 = vmatpush1.msra.mxu0 0.0
        %1577 = vmatprep.subr.mxu0 0.0
        %1578 = vmatpush1.msra.mxu0 0.0
        %1579 = vmatprep.subr.mxu0 0.0
        %1580 = vmatpush1.msra.mxu0 0.0
        %1581 = vmatprep.subr.mxu0 0.0
        %1582 = vmatpush1.msra.mxu0 0.0
        %1583 = vmatprep.subr.mxu0 0.0
        %1584 = vmatpush1.msra.mxu0 0.0
        %1585 = vmatprep.subr.mxu0 0.0
        %1586 = vmatpush1.msra.mxu0 0.0
        %1587 = vmatprep.subr.mxu0 0.0
        %1588 = vmatpush1.msra.mxu0 0.0
        %1589 = vmatprep.subr.mxu0 0.0
        %1590 = vmatpush1.msra.mxu0 0.0
        %1591 = vmatprep.subr.mxu0 0.0
        %1592 = vmatpush1.msra.mxu0 0.0
        %1593 = vmatprep.subr.mxu0 0.0
        %1594 = vmatpush1.msra.mxu0 %v1558
        %1595 = vmatprep.subr.mxu0 0.0
        %1596 = vmatpush1.msra.mxu0 %v1557
        %1597 = vmatprep.subr.mxu0 0.0
        %1598 = vmatpush1.msra.mxu0 %v1556
        %1599 = vmatprep.subr.mxu0 0.0
        %1600 = vmatpush1.msra.mxu0 %v1555
        %1601 = vmatprep.subr.mxu0 0.0
        %1602 = vmatpush2.msra.mxu0 0.0
        %1603 = vmatprep.subr.mxu0 0.0
        %1604 = vmatpush2.msra.mxu0 0.0
        %1605 = vmatprep.subr.mxu0 0.0
        %1606 = vmatpush2.msra.mxu0 0.0
        %1607 = vmatprep.subr.mxu0 0.0
        %1608 = vmatpush2.msra.mxu0 0.0
        %1609 = vmatprep.subr.mxu0 0.0
        %1610 = vmatpush2.msra.mxu0 0.0
        %1611 = vmatprep.subr.mxu0 0.0
        %1612 = vmatpush2.msra.mxu0 0.0
        %1613 = vmatprep.subr.mxu0 0.0
        %1614 = vmatpush2.msra.mxu0 0.0
        %1615 = vmatprep.subr.mxu0 0.0
        %1616 = vmatpush2.msra.mxu0 0.0
        %1617 = vmatprep.subr.mxu0 0.0
        %1618 = vmatpush2.msra.mxu0 0.0
        %1619 = vmatprep.subr.mxu0 0.0
        %1620 = vmatpush2.msra.mxu0 0.0
        %1621 = vmatprep.subr.mxu0 0.0
        %1622 = vmatpush2.msra.mxu0 0.0
        %1623 = vmatprep.subr.mxu0 0.0
        %1624 = vmatpush2.msra.mxu0 0.0
        %1625 = vmatprep.subr.mxu0 0.0
        %1626 = vmatpush2.msra.mxu0 0.0
        %1627 = vmatprep.subr.mxu0 0.0
        %1628 = vmatpush2.msra.mxu0 0.0
        %1629 = vmatprep.subr.mxu0 0.0
        %1630 = vmatpush2.msra.mxu0 0.0
        %1631 = vmatprep.subr.mxu0 0.0
        %1632 = vmatpush2.msra.mxu0 0.0
        %1633 = vmatprep.mubr.f32.mxu0 0.0
        %1634 = vmatmul.mubr.f32.gmra.mxu0 %v1567
        %v1635 = vpop.f32.mrf.mxu0
        %v1636 = vadd.f32 %v1564, %v1635
        %v1637 = vpop.f32.mrf.mxu0
        %1638 = vdwg.mxu0
        %v1639 = vmax.f32 %v1636, 0.0
        %v1640 = vld [vmem:[%s9] sm:$0xff]
        %v1641 = vld [vmem:[%s9 + $0x8] sm:$0xff]
        %v1642 = vld [vmem:[%s9 + $0x10] sm:$0xff]
        %v1643 = vld [vmem:[%s9 + $0x18] sm:$0xff]
        %v1644 = vld [vmem:[%s9 + $0x20] sm:$0xff]
        %v1645 = vld [vmem:[%s9 + $0x28] sm:$0xff]
        %v1646 = vld [vmem:[%s9 + $0x30] sm:$0xff]
        %v1647 = vld [vmem:[%s9 + $0x38] sm:$0xff]
        %v1648 = vld [vmem:[%s10] sm:$0x1]
        %v1650 = vlaneseq
        %v1651 = vshrl.u32 %v1650, 7
        %v1652 = vsub.s32 0, %v1651
        %v1653 = vrot.slane %v1648, %v1652
        %vm1655 = vcmask 523264
        %v1657 = vsel %vm1655, %v1639, 0
        %1659 = vmatprep.subr.mxu0 0.0
        %1660 = vmatpush1.msra.mxu0 0.0
        %1661 = vmatprep.subr.mxu0 0.0
        %1662 = vmatpush1.msra.mxu0 0.0
        %1663 = vmatprep.subr.mxu0 0.0
        %1664 = vmatpush1.msra.mxu0 0.0
        %1665 = vmatprep.subr.mxu0 0.0
        %1666 = vmatpush1.msra.mxu0 0.0
        %1667 = vmatprep.subr.mxu0 0.0
        %1668 = vmatpush1.msra.mxu0 0.0
        %1669 = vmatprep.subr.mxu0 0.0
        %1670 = vmatpush1.msra.mxu0 0.0
        %1671 = vmatprep.subr.mxu0 0.0
        %1672 = vmatpush1.msra.mxu0 0.0
        %1673 = vmatprep.subr.mxu0 0.0
        %1674 = vmatpush1.msra.mxu0 0.0
        %1675 = vmatprep.subr.mxu0 0.0
        %1676 = vmatpush1.msra.mxu0 %v1647
        %1677 = vmatprep.subr.mxu0 0.0
        %1678 = vmatpush1.msra.mxu0 %v1646
        %1679 = vmatprep.subr.mxu0 0.0
        %1680 = vmatpush1.msra.mxu0 %v1645
        %1681 = vmatprep.subr.mxu0 0.0
        %1682 = vmatpush1.msra.mxu0 %v1644
        %1683 = vmatprep.subr.mxu0 0.0
        %1684 = vmatpush1.msra.mxu0 %v1643
        %1685 = vmatprep.subr.mxu0 0.0
        %1686 = vmatpush1.msra.mxu0 %v1642
        %1687 = vmatprep.subr.mxu0 0.0
        %1688 = vmatpush1.msra.mxu0 %v1641
        %1689 = vmatprep.subr.mxu0 0.0
        %1690 = vmatpush1.msra.mxu0 %v1640
        %1691 = vmatprep.subr.mxu0 0.0
        %1692 = vmatpush2.msra.mxu0 0.0
        %1693 = vmatprep.subr.mxu0 0.0
        %1694 = vmatpush2.msra.mxu0 0.0
        %1695 = vmatprep.subr.mxu0 0.0
        %1696 = vmatpush2.msra.mxu0 0.0
        %1697 = vmatprep.subr.mxu0 0.0
        %1698 = vmatpush2.msra.mxu0 0.0
        %1699 = vmatprep.subr.mxu0 0.0
        %1700 = vmatpush2.msra.mxu0 0.0
        %1701 = vmatprep.subr.mxu0 0.0
        %1702 = vmatpush2.msra.mxu0 0.0
        %1703 = vmatprep.subr.mxu0 0.0
        %1704 = vmatpush2.msra.mxu0 0.0
        %1705 = vmatprep.subr.mxu0 0.0
        %1706 = vmatpush2.msra.mxu0 0.0
        %1707 = vmatprep.subr.mxu0 0.0
        %1708 = vmatpush2.msra.mxu0 0.0
        %1709 = vmatprep.subr.mxu0 0.0
        %1710 = vmatpush2.msra.mxu0 0.0
        %1711 = vmatprep.subr.mxu0 0.0
        %1712 = vmatpush2.msra.mxu0 0.0
        %1713 = vmatprep.subr.mxu0 0.0
        %1714 = vmatpush2.msra.mxu0 0.0
        %1715 = vmatprep.subr.mxu0 0.0
        %1716 = vmatpush2.msra.mxu0 0.0
        %1717 = vmatprep.subr.mxu0 0.0
        %1718 = vmatpush2.msra.mxu0 0.0
        %1719 = vmatprep.subr.mxu0 0.0
        %1720 = vmatpush2.msra.mxu0 0.0
        %1721 = vmatprep.subr.mxu0 0.0
        %1722 = vmatpush2.msra.mxu0 0.0
        %1723 = vmatprep.mubr.f32.mxu0 0.0
        %1724 = vmatmul.mubr.f32.gmra.mxu0 %v1657
        %v1725 = vpop.f32.mrf.mxu0
        %v1726 = vadd.f32 %v1653, %v1725
        %v1727 = vpop.f32.mrf.mxu0
        %1728 = vdwg.mxu0
        %v1729 = vadd.f32 %v1554, %v1726
        %v1730 = vsel %vm468, %v1729, 0.0
        %1731 = vadd.xlane.f32.xlu0 %v1730
        %v1732 = vpop.xlane.xlu0 %1731
        %v1733 = vmul.f32 %v1732, %v1528
        %v1734 = vsub.f32 %v1729, %v1733
        %v1735 = vmul.f32 %v1734, %v1734
        %v1736 = vsel %vm468, %v1735, 0.0
        %1737 = vadd.xlane.f32.xlu0 %v1736
        %v1738 = vpop.xlane.xlu0 %1737
        %v1739 = vmul.f32 %v1738, %v1528
        %v1740 = vadd.f32 %v1739, 1e-05
        %v1741 = vrsqrt.pop %v1740
        %v1742 = vmul.f32 %v1734, %v1741
        %v1743 = vld [vmem:[%s11] sm:$0x1]
        %v1745 = vlaneseq
        %v1746 = vshrl.u32 %v1745, 7
        %v1747 = vsub.s32 0, %v1746
        %v1748 = vrot.slane %v1743, %v1747
        %v1750 = vmul.f32 %v1742, %v1748
        %v1751 = vld [vmem:[%s12] sm:$0x1]
        %v1753 = vlaneseq
        %v1754 = vshrl.u32 %v1753, 7
        %v1755 = vsub.s32 0, %v1754
        %v1756 = vrot.slane %v1751, %v1755
        %v1758 = vadd.f32 %v1750, %v1756
        %1759 = vst.msk [vmem:[%s455] sm:$0xff] %vm468, %v1758
        %s1760 = sand.u32 %s316, 1
        %s1761 = scalar_lea.sflag [#allocation4], %s1760
        %s1762 = sand.u32 %s316, 1
        %s1763 = smul.addr %s1762, 8
        %s1764 = scalar_lea.vmem [#allocation5], %s1763
        // Predicated region
        $region77: #{tpu_custom_call.1} parent=71 // pred_check
          %p1765 = pneg %p326
        $region78: #{tpu_custom_call.1} parent=71 // pred_check_branch
          %1767 = sbr.rel (%p1765) target = $region80
        $region79: #{tpu_custom_call.1} parent=71 // pred_region
          %s1769 = ssub.s32 128, 128
          %1770 = vsyncadd %s1761, %s1769
          %s1771 = smul.addr %s30, 128
          %s1772 = scalar_lea.hbm %s13, %s1771
          %s1774 = sshll.u32 %s1764, 4
          %s1775 = int_to_ptr.vmem [resolvable:$true] %s1774
          %1777 = dma.vmem_to_hbm [thread:$0]  %s1775, 128, %s1772, %s1761
        $region80: #{tpu_custom_call.1} parent=71 // pred_fallthru
          _
      $region72: #{tpu_custom_call.1} parent=5 // pred_fallthru
        _
      %p1778 = scmp.le.s32.totalorder 2, %s25
      // Predicated region
      $region81: #{tpu_custom_call.1} parent=5 // pred_check
        %p1779 = pneg %p1778
      $region82: #{tpu_custom_call.1} parent=5 // pred_check_branch
        %1781 = sbr.rel (%p1779) target = $region84
      $region83: #{tpu_custom_call.1} parent=5 // pred_region
        %s1782 = ssub.s32 %s25, 2
        // Predicated region
        $region85: #{tpu_custom_call.1} parent=83 // pred_check
          %p1783 = pneg %p332
        $region86: #{tpu_custom_call.1} parent=83 // pred_check_branch
          %1785 = sbr.rel (%p1783) target = $region88
        $region87: #{tpu_custom_call.1} parent=83 // pred_region
          %s1786 = sand.u32 %s317, 1
          %s1787 = scalar_lea.sflag [#allocation4], %s1786
          %s1788 = sand.u32 %s317, 1
          %s1789 = smul.addr %s1788, 8
          %s1790 = scalar_lea.vmem [#allocation5], %s1789
          %1791 = dma.done %s1787, 128
        $region88: #{tpu_custom_call.1} parent=83 // pred_fallthru
          _
      $region84: #{tpu_custom_call.1} parent=5 // pred_fallthru
        _
    $region6: #{tpu_custom_call.1} parent=1 // loop_footer
      %s29 = sadd.s32 1, %s25
    $region7: #{tpu_custom_call.1} parent=1 // loop_footer_branch
      %24 = sbr.rel target = $region3
    $region8: #{tpu_custom_call.1} parent=1 // loop_exit
      _
    %1792 = vsyncpa [#allocation3], 1
    %s1793 = scalar_lea.sflag [#allocation3], 1
    %1794 = vsyncpa %s1793, 1
    %1795 = vsyncpa [#allocation4], 1
    %s1796 = scalar_lea.sflag [#allocation4], 1
    %1797 = vsyncpa %s1796, 1

</llo_original>
